<compile_context>
chip_gen: v7x
topology: tpu7x:2x2x1
jax: 0.10.0
libtpu: 0.0.40
codegen_flags: <defaults>
</compile_context>

<pallas_src>
import jax
import jax.numpy as jnp
from jax.experimental import pallas as pl
from jax.experimental.pallas import tpu as pltpu

HIDDEN = 256
SEQ = 384
LN_EPS = 1e-12


def _tensorcores_per_chip() -> int:
    """2 TensorCores per chip on v7x-class parts; 1 on v5e/v6e (grid = serial loop)."""
    try:
        kind = jax.devices()[0].device_kind.lower()
    except Exception:
        return 1
    return 2 if "v7" in kind else 1


def fused_kernel(x_ref, w_ref, bgb_ref, res_ref, o_ref):
    # x_ref: (TM, H) f32, w_ref: (H, H) bf16,
    # bgb_ref: (3, H) f32 with rows [bias, gamma, beta], res_ref: (TM, H) f32.
    bias = bgb_ref[0:1, :]
    gamma = bgb_ref[1:2, :]
    beta = bgb_ref[2:3, :]

    # bf16 inputs, f32 accumulation (MXU-native). Keep the cast in-kernel: it rides
    # in VALU slack under the MXU/DMA instead of costing an extra HBM round trip.
    x_bf = x_ref[...].astype(jnp.bfloat16)
    y = jnp.dot(x_bf, w_ref[...], preferred_element_type=jnp.float32)
    # TODO(synk): Dropout(p=0.1) is identity in eval mode; no RNG mask applied here.
    y = y + bias + res_ref[...]

    # One-pass LayerNorm moments over the last dim (eps inside rsqrt, biased var,
    # torch semantics). var clamped >= 0 to guard E[y^2]-mean^2 cancellation.
    mean = jnp.mean(y, axis=-1, keepdims=True)
    mean_sq = jnp.mean(y * y, axis=-1, keepdims=True)
    var = jnp.maximum(mean_sq - mean * mean, 0.0)
    inv = jax.lax.rsqrt(var + LN_EPS)
    o_ref[...] = ((y - mean) * (inv * gamma) + beta).astype(o_ref.dtype)


def fused_linear_add_layernorm(x, w_t_bf16, bias_gamma_beta, residual, *, tm=None):
    """x: (M, H) f32, w_t_bf16: (H, H) bf16 (already transposed so y = x @ w_t),
    bias_gamma_beta: (3, H) f32 rows [bias, gamma, beta], residual: (M, H) f32.
    Returns (M, H) f32."""
    M, H = x.shape
    assert H == HIDDEN
    if tm is None:
        # Single-TC chips: one grid step (whole M) -> no per-step pipeline overhead.
        # 2-TC chips (v7x): even 2-way row split sharded via "parallel" semantics.
        half = M // 2
        tm = half if (_tensorcores_per_chip() >= 2 and half > 0 and half % 8 == 0
                      and M % half == 0) else M
    assert M % tm == 0 and tm % 8 == 0

    f32 = jnp.dtype(jnp.float32).itemsize
    bf16 = jnp.dtype(jnp.bfloat16).itemsize
    cost = pl.CostEstimate(
        flops=2 * M * H * H,
        transcendentals=M,  # one rsqrt per row
        bytes_accessed=3 * M * H * f32 + H * H * bf16 + 3 * H * f32,
    )

    return pl.pallas_call(
        fused_kernel,
        out_shape=jax.ShapeDtypeStruct((M, H), x.dtype),
        grid_spec=pltpu.PrefetchScalarGridSpec(
            num_scalar_prefetch=0,
            grid=(M // tm,),
            in_specs=[
                pl.BlockSpec((tm, H), lambda i: (i, 0)),   # x rows
                pl.BlockSpec((H, H), lambda i: (0, 0)),    # weight (full, bf16)
                pl.BlockSpec((3, H), lambda i: (0, 0)),    # packed [bias; gamma; beta]
                pl.BlockSpec((tm, H), lambda i: (i, 0)),   # residual rows
            ],
            out_specs=pl.BlockSpec((tm, H), lambda i: (i, 0)),
        ),
        compiler_params=pltpu.CompilerParams(
            dimension_semantics=("parallel",),
        ),
        cost_estimate=cost,
    )(x, w_t_bf16, bias_gamma_beta, residual)


def module_forward(x351, x354, x323, params):
    # x351: (1, 384, 4, 64) -> view (1, 384, 256); contiguous row-major => free reshape.
    x355 = x351.reshape(x354)
    x2d = x355.reshape(-1, HIDDEN)          # (384, 256)
    res2d = x323.reshape(-1, HIDDEN)        # (384, 256)
    out2d = fused_linear_add_layernorm(x2d, params["w_t"], params["bgb"], res2d)
    return out2d.reshape(x354)


if __name__ == "__main__":
    key = jax.random.PRNGKey(0)
    k1, k2, k3, k4, k5, k6 = jax.random.split(key, 6)

    # inputs (deterministic)
    x351 = jax.random.normal(k1, (1, SEQ, 4, 64), dtype=jnp.float32)
    x323 = jax.random.normal(k2, (1, SEQ, HIDDEN), dtype=jnp.float32)
    x354 = (1, SEQ, HIDDEN)

    # parameters (deterministic init, matching nn.Linear / nn.LayerNorm shapes)
    # Linear(256, 256): torch weight is (out, in); store transposed (in, out) so y = x @ w_t.
    bound = 1.0 / (HIDDEN ** 0.5)
    w = jax.random.uniform(k3, (HIDDEN, HIDDEN), minval=-bound, maxval=bound,
                           dtype=jnp.float32)
    b = jax.random.uniform(k4, (HIDDEN,), minval=-bound, maxval=bound,
                           dtype=jnp.float32)
    # Non-trivial affine params so the elementwise-affine LN path is exercised.
    gamma = 1.0 + 0.1 * jax.random.normal(k5, (HIDDEN,), dtype=jnp.float32)
    beta = 0.1 * jax.random.normal(k6, (HIDDEN,), dtype=jnp.float32)

    params = {
        "w_t": w.T.astype(jnp.bfloat16),                        # bf16 weight for MXU + half DMA
        "bgb": jnp.stack([b, gamma, beta], axis=0),             # (3, 256) f32, one DMA
    }

    out = module_forward(x351, x354, x323, params)
    out = jax.block_until_ready(out)

    # reference check in plain JAX against full-f32 module semantics
    # (tolerance at bf16-matmul level; LayerNorm keeps error at few-1e-3 scale).
    x2d = x351.reshape(-1, HIDDEN)
    y_ref = x2d @ w.T + b
    y_ref = y_ref + x323.reshape(-1, HIDDEN)
    mu = jnp.mean(y_ref, axis=-1, keepdims=True)
    var = jnp.mean((y_ref - mu) ** 2, axis=-1, keepdims=True)
    ref = ((y_ref - mu) / jnp.sqrt(var + LN_EPS)) * gamma + beta
    ref = ref.reshape(x354)
    assert jnp.allclose(out, ref, atol=2e-2, rtol=2e-2), "mismatch vs reference"
    assert out.shape == x354 and out.dtype == jnp.float32

    print("KERNEL_OK")
</pallas_src>

<mosaic_0001>
module attributes {stable_mosaic.version = 11 : i64} {
  func.func @fused_kernel(%arg0: i32, %arg1: memref<384x256xf32, #tpu.memory_space<vmem>>, %arg2: memref<256x256xbf16, #tpu.memory_space<vmem>>, %arg3: memref<3x256xf32, #tpu.memory_space<vmem>>, %arg4: memref<384x256xf32, #tpu.memory_space<vmem>>, %arg5: memref<384x256xf32, #tpu.memory_space<vmem>>) attributes {dimension_semantics = [#tpu.dimension_semantics<parallel>], iteration_bounds = array<i64: 1>, scalar_prefetch = 0 : i64, scratch_operands = 0 : i64, tpu.core_type = #tpu.core_type<tc>, window_params = [{transform_indices = @transform_0, window_bounds = array<i64: 384, 256>}, {pipeline_mode = #tpu.pipeline_mode<synchronous>, transform_indices = @transform_1, window_bounds = array<i64: 256, 256>}, {pipeline_mode = #tpu.pipeline_mode<synchronous>, transform_indices = @transform_2, window_bounds = array<i64: 3, 256>}, {transform_indices = @transform_3, window_bounds = array<i64: 384, 256>}, {transform_indices = @transform_4, window_bounds = array<i64: 384, 256>}]} {
    %c0 = arith.constant 0 : index
    %c0_0 = arith.constant 0 : index
    %0 = vector.load %arg3[%c0, %c0_0] : memref<3x256xf32, #tpu.memory_space<vmem>>, vector<1x256xf32>
    %c1 = arith.constant 1 : index
    %c0_1 = arith.constant 0 : index
    %1 = vector.load %arg3[%c1, %c0_1] : memref<3x256xf32, #tpu.memory_space<vmem>>, vector<1x256xf32>
    %c2 = arith.constant 2 : index
    %c0_2 = arith.constant 0 : index
    %2 = vector.load %arg3[%c2, %c0_2] : memref<3x256xf32, #tpu.memory_space<vmem>>, vector<1x256xf32>
    %c0_3 = arith.constant 0 : index
    %c0_4 = arith.constant 0 : index
    %3 = vector.load %arg1[%c0_3, %c0_4] : memref<384x256xf32, #tpu.memory_space<vmem>>, vector<384x256xf32>
    %4 = arith.truncf %3 : vector<384x256xf32> to vector<384x256xbf16>
    %c0_5 = arith.constant 0 : index
    %c0_6 = arith.constant 0 : index
    %5 = vector.load %arg2[%c0_5, %c0_6] : memref<256x256xbf16, #tpu.memory_space<vmem>>, vector<256x256xbf16>
    %cst = arith.constant dense<0.000000e+00> : vector<384x256xf32>
    %6 = tpu.matmul %4, %5, %cst {dimension_numbers = #tpu.dot_dimension_numbers<[1], [0], [0], [1], [0, 0, 1, 1], [], []>} : vector<384x256xbf16>, vector<256x256xbf16>, vector<384x256xf32> -> vector<384x256xf32>
    %7 = vector.broadcast %0 : vector<1x256xf32> to vector<384x256xf32>
    %8 = arith.addf %6, %7 : vector<384x256xf32>
    %c0_7 = arith.constant 0 : index
    %c0_8 = arith.constant 0 : index
    %9 = vector.load %arg4[%c0_7, %c0_8] : memref<384x256xf32, #tpu.memory_space<vmem>>, vector<384x256xf32>
    %10 = arith.addf %8, %9 : vector<384x256xf32>
    %cst_9 = arith.constant dense<0.000000e+00> : vector<384xf32>
    %11 = vector.multi_reduction <add>, %10, %cst_9 [1] : vector<384x256xf32> to vector<384xf32>
    %12 = vector.shape_cast %11 : vector<384xf32> to vector<384x1xf32>
    %cst_10 = arith.constant 2.560000e+02 : f32
    %13 = vector.broadcast %cst_10 : f32 to vector<384x1xf32>
    %14 = arith.divf %12, %13 : vector<384x1xf32>
    %15 = arith.mulf %10, %10 : vector<384x256xf32>
    %cst_11 = arith.constant dense<0.000000e+00> : vector<384xf32>
    %16 = vector.multi_reduction <add>, %15, %cst_11 [1] : vector<384x256xf32> to vector<384xf32>
    %17 = vector.shape_cast %16 : vector<384xf32> to vector<384x1xf32>
    %cst_12 = arith.constant 2.560000e+02 : f32
    %18 = vector.broadcast %cst_12 : f32 to vector<384x1xf32>
    %19 = arith.divf %17, %18 : vector<384x1xf32>
    %20 = arith.mulf %14, %14 : vector<384x1xf32>
    %21 = arith.subf %19, %20 : vector<384x1xf32>
    %cst_13 = arith.constant 0.000000e+00 : f32
    %22 = vector.broadcast %cst_13 : f32 to vector<384x1xf32>
    %23 = arith.maximumf %21, %22 : vector<384x1xf32>
    %cst_14 = arith.constant 9.99999996E-13 : f32
    %24 = vector.broadcast %cst_14 : f32 to vector<384x1xf32>
    %25 = arith.addf %23, %24 : vector<384x1xf32>
    %26 = math.rsqrt %25 : vector<384x1xf32>
    %27 = vector.broadcast %14 : vector<384x1xf32> to vector<384x256xf32>
    %28 = arith.subf %10, %27 : vector<384x256xf32>
    %29 = vector.broadcast %26 : vector<384x1xf32> to vector<384x256xf32>
    %30 = vector.broadcast %1 : vector<1x256xf32> to vector<384x256xf32>
    %31 = arith.mulf %29, %30 : vector<384x256xf32>
    %32 = arith.mulf %28, %31 : vector<384x256xf32>
    %33 = vector.broadcast %2 : vector<1x256xf32> to vector<384x256xf32>
    %34 = arith.addf %32, %33 : vector<384x256xf32>
    %c0_15 = arith.constant 0 : index
    %c0_16 = arith.constant 0 : index
    %35 = vector.load %arg5[%c0_15, %c0_16] : memref<384x256xf32, #tpu.memory_space<vmem>>, vector<384x256xf32>
    tpu.vector_store %arg5[%c0_15, %c0_16], %34 {strides = array<i32>} : memref<384x256xf32, #tpu.memory_space<vmem>>, vector<384x256xf32>,
    return
  }
  func.func @transform_0(%arg0: i32) -> (i32, i32) {
    %c0_i32 = arith.constant 0 : i32
    %c0_i32_0 = arith.constant 0 : i32
    return %arg0, %c0_i32 : i32, i32
  }
  func.func @transform_1(%arg0: i32) -> (i32, i32) {
    %c0_i32 = arith.constant 0 : i32
    %c0_i32_0 = arith.constant 0 : i32
    %c0_i32_1 = arith.constant 0 : i32
    return %c0_i32, %c0_i32_0 : i32, i32
  }
  func.func @transform_2(%arg0: i32) -> (i32, i32) {
    %c0_i32 = arith.constant 0 : i32
    %c0_i32_0 = arith.constant 0 : i32
    %c0_i32_1 = arith.constant 0 : i32
    return %c0_i32, %c0_i32_0 : i32, i32
  }
  func.func @transform_3(%arg0: i32) -> (i32, i32) {
    %c0_i32 = arith.constant 0 : i32
    %c0_i32_0 = arith.constant 0 : i32
    return %arg0, %c0_i32 : i32, i32
  }
  func.func @transform_4(%arg0: i32) -> (i32, i32) {
    %c0_i32 = arith.constant 0 : i32
    %c0_i32_0 = arith.constant 0 : i32
    return %arg0, %c0_i32 : i32, i32
  }
}

</mosaic_0001>

<llo_original>
// kernel: tpu_custom_call.1
$region0: #{tpu_custom_call.1}
  #allocation0 [shape = 'u32[]', space=smem, size = 0x4, offset = 0x4, fixed_abs, tag = 'smem constant byte address 0x4 - core index']
  #allocation1 [shape = 'u32[144,128]{1,0:T(1,128)}', space=vmem, size = 0x12000, scoped, tag = 'internal scratch']
  %s0 = inlined_call_operand.hbm [shape: f32[384,256], index: 0, kind: input, shape index: {}]
  %s1 = inlined_call_operand.hbm [shape: bf16[256,256], index: 1, kind: input, shape index: {}]
  %s2 = inlined_call_operand.hbm [shape: f32[3,256], index: 2, kind: input, shape index: {}]
  %s3 = inlined_call_operand.hbm [shape: f32[384,256], index: 3, kind: input, shape index: {}]
  %s4 = inlined_call_operand.hbm [shape: f32[384,256], index: 4, kind: output, shape index: {}]
  %s5 = sld [smem:[#allocation0]]
  $region42: #{tpu_custom_call.1} parent=0
    _
  %s7 = ssub.s32 1, %s5
  %s8 = scalar_select 0, %s7, %s5
  $region1: #{tpu_custom_call.1} parent=0
    #allocation2 [shape = 'u8[393216]{0}', space=vmem, size = 0x60000, scoped, tag = 'input window, operand 0, single buffered']
    #allocation3 [shape = 's32[1]{0}', space=sflag, size = 0x4, scoped, tag = 'scoped memory for tpu_custom_call.1']
    #allocation4 [shape = 's32[1]{0}', space=sflag, size = 0x4, scoped, tag = 'scoped memory for tpu_custom_call.1']
    #allocation5 [shape = 'u8[131072]{0}', space=vmem, size = 0x20000, scoped, tag = 'input window, operand 1, single buffered']
    #allocation6 [shape = 's32[1]{0}', space=sflag, size = 0x4, scoped, tag = 'scoped memory for tpu_custom_call.1']
    #allocation7 [shape = 'u8[4096]{0}', space=vmem, size = 0x1000, scoped, tag = 'input window, operand 2, single buffered']
    #allocation8 [shape = 'u8[393216]{0}', space=vmem, size = 0x60000, scoped, tag = 'input window, operand 3, single buffered']
    #allocation9 [shape = 's32[1]{0}', space=sflag, size = 0x4, scoped, tag = 'scoped memory for tpu_custom_call.1']
    #allocation10 [shape = 'u8[393216]{0}', space=vmem, size = 0x60000, scoped, tag = 'output window, operand 0, single buffered']
    %9 = vsyncpa [#allocation3], 0
    %10 = vsyncpa [#allocation6], 0
    %11 = vsyncpa [#allocation9], 0
    %12 = vsyncpa [#allocation4], 0
    // Predicated region
    $region2: #{tpu_custom_call.1} parent=1 // pred_check
      _
    $region3: #{tpu_custom_call.1} parent=1 // pred_check_branch
      %14 = sbr.rel (0) target = $region5
    $region4: #{tpu_custom_call.1} parent=1 // pred_region
      %s16 = ssub.s32 12288, 12288
      %17 = vsyncadd [#allocation3], %s16
      %s18 = sshll.u32 [#allocation2], 4
      %s19 = int_to_ptr.vmem [resolvable:$true] %s18
      %24 = dma.hbm_to_vmem [thread:$0]  %s0, 12288, %s19, [#allocation3], 256, 256, 16
    $region5: #{tpu_custom_call.1} parent=1 // pred_fallthru
      _
    // Predicated region
    $region6: #{tpu_custom_call.1} parent=1 // pred_check
      _
    $region7: #{tpu_custom_call.1} parent=1 // pred_check_branch
      %26 = sbr.rel (0) target = $region9
    $region8: #{tpu_custom_call.1} parent=1 // pred_region
      %s28 = ssub.s32 4096, 4096
      %29 = vsyncadd [#allocation6], %s28
      %s30 = sshll.u32 [#allocation5], 4
      %s31 = int_to_ptr.vmem [resolvable:$true] %s30
      %36 = dma.hbm_to_vmem [thread:$0]  %s1, 4096, %s31, [#allocation6], 128, 128, 8
    $region9: #{tpu_custom_call.1} parent=1 // pred_fallthru
      _
    // Predicated region
    $region10: #{tpu_custom_call.1} parent=1 // pred_check
      _
    $region11: #{tpu_custom_call.1} parent=1 // pred_check_branch
      %38 = sbr.rel (0) target = $region13
    $region12: #{tpu_custom_call.1} parent=1 // pred_region
      %s40 = ssub.s32 128, 128
      %41 = vsyncadd [#allocation6], %s40
      %s43 = sshll.u32 [#allocation7], 4
      %s44 = int_to_ptr.vmem [resolvable:$true] %s43
      %46 = dma.hbm_to_vmem [thread:$0]  %s2, 128, %s44, [#allocation6]
    $region13: #{tpu_custom_call.1} parent=1 // pred_fallthru
      _
    // Predicated region
    $region14: #{tpu_custom_call.1} parent=1 // pred_check
      _
    $region15: #{tpu_custom_call.1} parent=1 // pred_check_branch
      %48 = sbr.rel (0) target = $region17
    $region16: #{tpu_custom_call.1} parent=1 // pred_region
      %s50 = ssub.s32 12288, 12288
      %51 = vsyncadd [#allocation9], %s50
      %s52 = sshll.u32 [#allocation8], 4
      %s53 = int_to_ptr.vmem [resolvable:$true] %s52
      %58 = dma.hbm_to_vmem [thread:$0]  %s3, 12288, %s53, [#allocation9], 256, 256, 16
    $region17: #{tpu_custom_call.1} parent=1 // pred_fallthru
      _
    // Predicated region
    $region18: #{tpu_custom_call.1} parent=1 // pred_check
      _
    $region19: #{tpu_custom_call.1} parent=1 // pred_check_branch
      %60 = sbr.rel (0) target = $region21
    $region20: #{tpu_custom_call.1} parent=1 // pred_region
      %61 = dma.done [#allocation3], 12288
    $region21: #{tpu_custom_call.1} parent=1 // pred_fallthru
      _
    // Predicated region
    $region22: #{tpu_custom_call.1} parent=1 // pred_check
      _
    $region23: #{tpu_custom_call.1} parent=1 // pred_check_branch
      %63 = sbr.rel (0) target = $region25
    $region24: #{tpu_custom_call.1} parent=1 // pred_region
      %64 = dma.done [#allocation6], 4096
    $region25: #{tpu_custom_call.1} parent=1 // pred_fallthru
      _
    // Predicated region
    $region26: #{tpu_custom_call.1} parent=1 // pred_check
      _
    $region27: #{tpu_custom_call.1} parent=1 // pred_check_branch
      %66 = sbr.rel (0) target = $region29
    $region28: #{tpu_custom_call.1} parent=1 // pred_region
      %67 = dma.done [#allocation6], 128
    $region29: #{tpu_custom_call.1} parent=1 // pred_fallthru
      _
    // Predicated region
    $region30: #{tpu_custom_call.1} parent=1 // pred_check
      _
    $region31: #{tpu_custom_call.1} parent=1 // pred_check_branch
      %69 = sbr.rel (0) target = $region33
    $region32: #{tpu_custom_call.1} parent=1 // pred_region
      %70 = dma.done [#allocation9], 12288
    $region33: #{tpu_custom_call.1} parent=1 // pred_fallthru
      _
    %v71 = vld [vmem:[#allocation7] ss:$4 sm:$0x3]
    %s72 = scalar_lea.vmem [#allocation7], 1
    %v73 = vld [vmem:[%s72] ss:$4 sm:$0x3]
    %s74 = scalar_lea.vmem [#allocation7], 2
    %v75 = vld [vmem:[%s74] ss:$4 sm:$0x3]
    %v76 = vld [vmem:[#allocation2] sm:$0xff]
    %v77 = vld [vmem:[#allocation2 + $0x8] sm:$0xff]
    %v78 = vld [vmem:[#allocation2 + $0x10] sm:$0xff]
    %v79 = vld [vmem:[#allocation2 + $0x18] sm:$0xff]
    %v80 = vld [vmem:[#allocation2 + $0x20] sm:$0xff]
    %v81 = vld [vmem:[#allocation2 + $0x28] sm:$0xff]
    %v82 = vld [vmem:[#allocation2 + $0x30] sm:$0xff]
    %v83 = vld [vmem:[#allocation2 + $0x38] sm:$0xff]
    %v84 = vld [vmem:[#allocation2 + $0x40] sm:$0xff]
    %v85 = vld [vmem:[#allocation2 + $0x48] sm:$0xff]
    %v86 = vld [vmem:[#allocation2 + $0x50] sm:$0xff]
    %v87 = vld [vmem:[#allocation2 + $0x58] sm:$0xff]
    %v88 = vld [vmem:[#allocation2 + $0x60] sm:$0xff]
    %v89 = vld [vmem:[#allocation2 + $0x68] sm:$0xff]
    %v90 = vld [vmem:[#allocation2 + $0x70] sm:$0xff]
    %v91 = vld [vmem:[#allocation2 + $0x78] sm:$0xff]
    %v92 = vld [vmem:[#allocation2 + $0x80] sm:$0xff]
    %v93 = vld [vmem:[#allocation2 + $0x88] sm:$0xff]
    %v94 = vld [vmem:[#allocation2 + $0x90] sm:$0xff]
    %v95 = vld [vmem:[#allocation2 + $0x98] sm:$0xff]
    %v96 = vld [vmem:[#allocation2 + $0xa0] sm:$0xff]
    %v97 = vld [vmem:[#allocation2 + $0xa8] sm:$0xff]
    %v98 = vld [vmem:[#allocation2 + $0xb0] sm:$0xff]
    %v99 = vld [vmem:[#allocation2 + $0xb8] sm:$0xff]
    %v100 = vld [vmem:[#allocation2 + $0xc0] sm:$0xff]
    %v101 = vld [vmem:[#allocation2 + $0xc8] sm:$0xff]
    %v102 = vld [vmem:[#allocation2 + $0xd0] sm:$0xff]
    %v103 = vld [vmem:[#allocation2 + $0xd8] sm:$0xff]
    %v104 = vld [vmem:[#allocation2 + $0xe0] sm:$0xff]
    %v105 = vld [vmem:[#allocation2 + $0xe8] sm:$0xff]
    %v106 = vld [vmem:[#allocation2 + $0xf0] sm:$0xff]
    %v107 = vld [vmem:[#allocation2 + $0xf8] sm:$0xff]
    %v108 = vld [vmem:[#allocation2 + $0x100] sm:$0xff]
    %v109 = vld [vmem:[#allocation2 + $0x108] sm:$0xff]
    %v110 = vld [vmem:[#allocation2 + $0x110] sm:$0xff]
    %v111 = vld [vmem:[#allocation2 + $0x118] sm:$0xff]
    %v112 = vld [vmem:[#allocation2 + $0x120] sm:$0xff]
    %v113 = vld [vmem:[#allocation2 + $0x128] sm:$0xff]
    %v114 = vld [vmem:[#allocation2 + $0x130] sm:$0xff]
    %v115 = vld [vmem:[#allocation2 + $0x138] sm:$0xff]
    %v116 = vld [vmem:[#allocation2 + $0x140] sm:$0xff]
    %v117 = vld [vmem:[#allocation2 + $0x148] sm:$0xff]
    %v118 = vld [vmem:[#allocation2 + $0x150] sm:$0xff]
    %v119 = vld [vmem:[#allocation2 + $0x158] sm:$0xff]
    %v120 = vld [vmem:[#allocation2 + $0x160] sm:$0xff]
    %v121 = vld [vmem:[#allocation2 + $0x168] sm:$0xff]
    %v122 = vld [vmem:[#allocation2 + $0x170] sm:$0xff]
    %v123 = vld [vmem:[#allocation2 + $0x178] sm:$0xff]
    %v124 = vld [vmem:[#allocation2 + $0x180] sm:$0xff]
    %v125 = vld [vmem:[#allocation2 + $0x188] sm:$0xff]
    %v126 = vld [vmem:[#allocation2 + $0x190] sm:$0xff]
    %v127 = vld [vmem:[#allocation2 + $0x198] sm:$0xff]
    %v128 = vld [vmem:[#allocation2 + $0x1a0] sm:$0xff]
    %v129 = vld [vmem:[#allocation2 + $0x1a8] sm:$0xff]
    %v130 = vld [vmem:[#allocation2 + $0x1b0] sm:$0xff]
    %v131 = vld [vmem:[#allocation2 + $0x1b8] sm:$0xff]
    %v132 = vld [vmem:[#allocation2 + $0x1c0] sm:$0xff]
    %v133 = vld [vmem:[#allocation2 + $0x1c8] sm:$0xff]
    %v134 = vld [vmem:[#allocation2 + $0x1d0] sm:$0xff]
    %v135 = vld [vmem:[#allocation2 + $0x1d8] sm:$0xff]
    %v136 = vld [vmem:[#allocation2 + $0x1e0] sm:$0xff]
    %v137 = vld [vmem:[#allocation2 + $0x1e8] sm:$0xff]
    %v138 = vld [vmem:[#allocation2 + $0x1f0] sm:$0xff]
    %v139 = vld [vmem:[#allocation2 + $0x1f8] sm:$0xff]
    %v140 = vld [vmem:[#allocation2 + $0x200] sm:$0xff]
    %v141 = vld [vmem:[#allocation2 + $0x208] sm:$0xff]
    %v142 = vld [vmem:[#allocation2 + $0x210] sm:$0xff]
    %v143 = vld [vmem:[#allocation2 + $0x218] sm:$0xff]
    %v144 = vld [vmem:[#allocation2 + $0x220] sm:$0xff]
    %v145 = vld [vmem:[#allocation2 + $0x228] sm:$0xff]
    %v146 = vld [vmem:[#allocation2 + $0x230] sm:$0xff]
    %v147 = vld [vmem:[#allocation2 + $0x238] sm:$0xff]
    %v148 = vld [vmem:[#allocation2 + $0x240] sm:$0xff]
    %v149 = vld [vmem:[#allocation2 + $0x248] sm:$0xff]
    %v150 = vld [vmem:[#allocation2 + $0x250] sm:$0xff]
    %v151 = vld [vmem:[#allocation2 + $0x258] sm:$0xff]
    %v152 = vld [vmem:[#allocation2 + $0x260] sm:$0xff]
    %v153 = vld [vmem:[#allocation2 + $0x268] sm:$0xff]
    %v154 = vld [vmem:[#allocation2 + $0x270] sm:$0xff]
    %v155 = vld [vmem:[#allocation2 + $0x278] sm:$0xff]
    %v156 = vld [vmem:[#allocation2 + $0x280] sm:$0xff]
    %v157 = vld [vmem:[#allocation2 + $0x288] sm:$0xff]
    %v158 = vld [vmem:[#allocation2 + $0x290] sm:$0xff]
    %v159 = vld [vmem:[#allocation2 + $0x298] sm:$0xff]
    %v160 = vld [vmem:[#allocation2 + $0x2a0] sm:$0xff]
    %v161 = vld [vmem:[#allocation2 + $0x2a8] sm:$0xff]
    %v162 = vld [vmem:[#allocation2 + $0x2b0] sm:$0xff]
    %v163 = vld [vmem:[#allocation2 + $0x2b8] sm:$0xff]
    %v164 = vld [vmem:[#allocation2 + $0x2c0] sm:$0xff]
    %v165 = vld [vmem:[#allocation2 + $0x2c8] sm:$0xff]
    %v166 = vld [vmem:[#allocation2 + $0x2d0] sm:$0xff]
    %v167 = vld [vmem:[#allocation2 + $0x2d8] sm:$0xff]
    %v168 = vld [vmem:[#allocation2 + $0x2e0] sm:$0xff]
    %v169 = vld [vmem:[#allocation2 + $0x2e8] sm:$0xff]
    %v170 = vld [vmem:[#allocation2 + $0x2f0] sm:$0xff]
    %v171 = vld [vmem:[#allocation2 + $0x2f8] sm:$0xff]
    %v172 = vpack.c.bf16 %v78, %v76
    %v173 = vpack.c.bf16 %v79, %v77
    %v174 = vpack.c.bf16 %v82, %v80
    %v175 = vpack.c.bf16 %v83, %v81
    %v176 = vpack.c.bf16 %v86, %v84
    %v177 = vpack.c.bf16 %v87, %v85
    %v178 = vpack.c.bf16 %v90, %v88
    %v179 = vpack.c.bf16 %v91, %v89
    %v180 = vpack.c.bf16 %v94, %v92
    %v181 = vpack.c.bf16 %v95, %v93
    %v182 = vpack.c.bf16 %v98, %v96
    %v183 = vpack.c.bf16 %v99, %v97
    %v184 = vpack.c.bf16 %v102, %v100
    %v185 = vpack.c.bf16 %v103, %v101
    %v186 = vpack.c.bf16 %v106, %v104
    %v187 = vpack.c.bf16 %v107, %v105
    %v188 = vpack.c.bf16 %v110, %v108
    %v189 = vpack.c.bf16 %v111, %v109
    %v190 = vpack.c.bf16 %v114, %v112
    %v191 = vpack.c.bf16 %v115, %v113
    %v192 = vpack.c.bf16 %v118, %v116
    %v193 = vpack.c.bf16 %v119, %v117
    %v194 = vpack.c.bf16 %v122, %v120
    %v195 = vpack.c.bf16 %v123, %v121
    %v196 = vpack.c.bf16 %v126, %v124
    %v197 = vpack.c.bf16 %v127, %v125
    %v198 = vpack.c.bf16 %v130, %v128
    %v199 = vpack.c.bf16 %v131, %v129
    %v200 = vpack.c.bf16 %v134, %v132
    %v201 = vpack.c.bf16 %v135, %v133
    %v202 = vpack.c.bf16 %v138, %v136
    %v203 = vpack.c.bf16 %v139, %v137
    %v204 = vpack.c.bf16 %v142, %v140
    %v205 = vpack.c.bf16 %v143, %v141
    %v206 = vpack.c.bf16 %v146, %v144
    %v207 = vpack.c.bf16 %v147, %v145
    %v208 = vpack.c.bf16 %v150, %v148
    %v209 = vpack.c.bf16 %v151, %v149
    %v210 = vpack.c.bf16 %v154, %v152
    %v211 = vpack.c.bf16 %v155, %v153
    %v212 = vpack.c.bf16 %v158, %v156
    %v213 = vpack.c.bf16 %v159, %v157
    %v214 = vpack.c.bf16 %v162, %v160
    %v215 = vpack.c.bf16 %v163, %v161
    %v216 = vpack.c.bf16 %v166, %v164
    %v217 = vpack.c.bf16 %v167, %v165
    %v218 = vpack.c.bf16 %v170, %v168
    %v219 = vpack.c.bf16 %v171, %v169
    %v220 = vld [vmem:[#allocation5] sm:$0xff]
    %v221 = vld [vmem:[#allocation5 + $0x8] sm:$0xff]
    %v222 = vld [vmem:[#allocation5 + $0x10] sm:$0xff]
    %v223 = vld [vmem:[#allocation5 + $0x18] sm:$0xff]
    %v224 = vld [vmem:[#allocation5 + $0x20] sm:$0xff]
    %v225 = vld [vmem:[#allocation5 + $0x28] sm:$0xff]
    %v226 = vld [vmem:[#allocation5 + $0x30] sm:$0xff]
    %v227 = vld [vmem:[#allocation5 + $0x38] sm:$0xff]
    %v228 = vld [vmem:[#allocation5 + $0x40] sm:$0xff]
    %v229 = vld [vmem:[#allocation5 + $0x48] sm:$0xff]
    %v230 = vld [vmem:[#allocation5 + $0x50] sm:$0xff]
    %v231 = vld [vmem:[#allocation5 + $0x58] sm:$0xff]
    %v232 = vld [vmem:[#allocation5 + $0x60] sm:$0xff]
    %v233 = vld [vmem:[#allocation5 + $0x68] sm:$0xff]
    %v234 = vld [vmem:[#allocation5 + $0x70] sm:$0xff]
    %v235 = vld [vmem:[#allocation5 + $0x78] sm:$0xff]
    %v236 = vld [vmem:[#allocation5 + $0x80] sm:$0xff]
    %v237 = vld [vmem:[#allocation5 + $0x88] sm:$0xff]
    %v238 = vld [vmem:[#allocation5 + $0x90] sm:$0xff]
    %v239 = vld [vmem:[#allocation5 + $0x98] sm:$0xff]
    %v240 = vld [vmem:[#allocation5 + $0xa0] sm:$0xff]
    %v241 = vld [vmem:[#allocation5 + $0xa8] sm:$0xff]
    %v242 = vld [vmem:[#allocation5 + $0xb0] sm:$0xff]
    %v243 = vld [vmem:[#allocation5 + $0xb8] sm:$0xff]
    %v244 = vld [vmem:[#allocation5 + $0xc0] sm:$0xff]
    %v245 = vld [vmem:[#allocation5 + $0xc8] sm:$0xff]
    %v246 = vld [vmem:[#allocation5 + $0xd0] sm:$0xff]
    %v247 = vld [vmem:[#allocation5 + $0xd8] sm:$0xff]
    %v248 = vld [vmem:[#allocation5 + $0xe0] sm:$0xff]
    %v249 = vld [vmem:[#allocation5 + $0xe8] sm:$0xff]
    %v250 = vld [vmem:[#allocation5 + $0xf0] sm:$0xff]
    %v251 = vld [vmem:[#allocation5 + $0xf8] sm:$0xff]
    %v253 = vlaneseq
    %v254 = vshrl.u32 %v253, 7
    %v255 = vsub.s32 0, %v254
    %v256 = vrot.slane %v71, %v255
    %v257 = vlaneseq
    %v258 = vshrl.u32 %v257, 7
    %v259 = vsub.s32 1, %v258
    %v260 = vrot.slane %v71, %v259
    %v295 = vunpack.c.l.b16 %v220
    %v296 = vunpack.c.h.b16 %v220
    %v297 = vunpack.c.l.b16 %v221
    %v298 = vunpack.c.h.b16 %v221
    %v299 = vunpack.c.l.b16 %v222
    %v300 = vunpack.c.h.b16 %v222
    %v301 = vunpack.c.l.b16 %v223
    %v302 = vunpack.c.h.b16 %v223
    %v303 = vunpack.c.l.b16 %v224
    %v304 = vunpack.c.h.b16 %v224
    %v305 = vunpack.c.l.b16 %v225
    %v306 = vunpack.c.h.b16 %v225
    %v307 = vunpack.c.l.b16 %v226
    %v308 = vunpack.c.h.b16 %v226
    %v309 = vunpack.c.l.b16 %v227
    %v310 = vunpack.c.h.b16 %v227
    %v311 = vunpack.c.l.b16 %v228
    %v312 = vunpack.c.h.b16 %v228
    %v313 = vunpack.c.l.b16 %v229
    %v314 = vunpack.c.h.b16 %v229
    %v315 = vunpack.c.l.b16 %v230
    %v316 = vunpack.c.h.b16 %v230
    %v317 = vunpack.c.l.b16 %v231
    %v318 = vunpack.c.h.b16 %v231
    %v319 = vunpack.c.l.b16 %v232
    %v320 = vunpack.c.h.b16 %v232
    %v321 = vunpack.c.l.b16 %v233
    %v322 = vunpack.c.h.b16 %v233
    %v323 = vunpack.c.l.b16 %v234
    %v324 = vunpack.c.h.b16 %v234
    %v325 = vunpack.c.l.b16 %v235
    %v326 = vunpack.c.h.b16 %v235
    %v327 = vunpack.c.l.b16 %v236
    %v328 = vunpack.c.h.b16 %v236
    %v329 = vunpack.c.l.b16 %v237
    %v330 = vunpack.c.h.b16 %v237
    %v331 = vunpack.c.l.b16 %v238
    %v332 = vunpack.c.h.b16 %v238
    %v333 = vunpack.c.l.b16 %v239
    %v334 = vunpack.c.h.b16 %v239
    %v335 = vunpack.c.l.b16 %v240
    %v336 = vunpack.c.h.b16 %v240
    %v337 = vunpack.c.l.b16 %v241
    %v338 = vunpack.c.h.b16 %v241
    %v339 = vunpack.c.l.b16 %v242
    %v340 = vunpack.c.h.b16 %v242
    %v341 = vunpack.c.l.b16 %v243
    %v342 = vunpack.c.h.b16 %v243
    %v343 = vunpack.c.l.b16 %v244
    %v344 = vunpack.c.h.b16 %v244
    %v345 = vunpack.c.l.b16 %v245
    %v346 = vunpack.c.h.b16 %v245
    %v347 = vunpack.c.l.b16 %v246
    %v348 = vunpack.c.h.b16 %v246
    %v349 = vunpack.c.l.b16 %v247
    %v350 = vunpack.c.h.b16 %v247
    %v351 = vunpack.c.l.b16 %v248
    %v352 = vunpack.c.h.b16 %v248
    %v353 = vunpack.c.l.b16 %v249
    %v354 = vunpack.c.h.b16 %v249
    %v355 = vunpack.c.l.b16 %v250
    %v356 = vunpack.c.h.b16 %v250
    %v357 = vunpack.c.l.b16 %v251
    %v358 = vunpack.c.h.b16 %v251
    %v359 = vpack.c.b16 %v297, %v295
    %v360 = vpack.c.b16 %v298, %v296
    %v361 = vpack.c.b16 %v301, %v299
    %v362 = vpack.c.b16 %v302, %v300
    %v363 = vpack.c.b16 %v305, %v303
    %v364 = vpack.c.b16 %v306, %v304
    %v365 = vpack.c.b16 %v309, %v307
    %v366 = vpack.c.b16 %v310, %v308
    %v367 = vpack.c.b16 %v313, %v311
    %v368 = vpack.c.b16 %v314, %v312
    %v369 = vpack.c.b16 %v317, %v315
    %v370 = vpack.c.b16 %v318, %v316
    %v371 = vpack.c.b16 %v321, %v319
    %v372 = vpack.c.b16 %v322, %v320
    %v373 = vpack.c.b16 %v325, %v323
    %v374 = vpack.c.b16 %v326, %v324
    %v375 = vpack.c.b16 %v329, %v327
    %v376 = vpack.c.b16 %v330, %v328
    %v377 = vpack.c.b16 %v333, %v331
    %v378 = vpack.c.b16 %v334, %v332
    %v379 = vpack.c.b16 %v337, %v335
    %v380 = vpack.c.b16 %v338, %v336
    %v381 = vpack.c.b16 %v341, %v339
    %v382 = vpack.c.b16 %v342, %v340
    %v383 = vpack.c.b16 %v345, %v343
    %v384 = vpack.c.b16 %v346, %v344
    %v385 = vpack.c.b16 %v349, %v347
    %v386 = vpack.c.b16 %v350, %v348
    %v387 = vpack.c.b16 %v353, %v351
    %v388 = vpack.c.b16 %v354, %v352
    %v389 = vpack.c.b16 %v357, %v355
    %v390 = vpack.c.b16 %v358, %v356
    %423 = vmatprep.subr.bf16.mxu0 %v360
    %424 = vmatpush1.bf16.msra.mxu0 %v359
    %425 = vmatprep.subr.bf16.mxu0 %v362
    %426 = vmatpush1.bf16.msra.mxu0 %v361
    %427 = vmatprep.subr.bf16.mxu0 %v364
    %428 = vmatpush1.bf16.msra.mxu0 %v363
    %429 = vmatprep.subr.bf16.mxu0 %v366
    %430 = vmatpush1.bf16.msra.mxu0 %v365
    %431 = vmatprep.subr.bf16.mxu0 %v368
    %432 = vmatpush1.bf16.msra.mxu0 %v367
    %433 = vmatprep.subr.bf16.mxu0 %v370
    %434 = vmatpush1.bf16.msra.mxu0 %v369
    %435 = vmatprep.subr.bf16.mxu0 %v372
    %436 = vmatpush1.bf16.msra.mxu0 %v371
    %437 = vmatprep.subr.bf16.mxu0 %v374
    %438 = vmatpush1.bf16.msra.mxu0 %v373
    %439 = vmatprep.subr.bf16.mxu0 %v376
    %440 = vmatpush1.bf16.msra.mxu0 %v375
    %441 = vmatprep.subr.bf16.mxu0 %v378
    %442 = vmatpush1.bf16.msra.mxu0 %v377
    %443 = vmatprep.subr.bf16.mxu0 %v380
    %444 = vmatpush1.bf16.msra.mxu0 %v379
    %445 = vmatprep.subr.bf16.mxu0 %v382
    %446 = vmatpush1.bf16.msra.mxu0 %v381
    %447 = vmatprep.subr.bf16.mxu0 %v384
    %448 = vmatpush1.bf16.msra.mxu0 %v383
    %449 = vmatprep.subr.bf16.mxu0 %v386
    %450 = vmatpush1.bf16.msra.mxu0 %v385
    %451 = vmatprep.subr.bf16.mxu0 %v388
    %452 = vmatpush1.bf16.msra.mxu0 %v387
    %453 = vmatprep.subr.bf16.mxu0 %v390
    %454 = vmatpush1.bf16.msra.mxu0 %v389
    %455 = vmatprep.mubr.bf16.mxu0 %v173
    %456 = vmatmul.mubr.bf16.gmra.mrb[0].mxu0 %v172
    %v457 = vpop.f32.mrb[0].mxu0
    %v458 = vadd.f32 %v256, %v457
    %v459 = vpop.f32.mrb[0].mxu0
    %v460 = vadd.f32 %v260, %v459
    %v461 = vpop.f32.mrb[0].mxu0
    %v462 = vadd.f32 %v256, %v461
    %v463 = vpop.f32.mrb[0].mxu0
    %v464 = vadd.f32 %v260, %v463
    %465 = vmatprep.mubr.bf16.mxu0 %v175
    %466 = vmatmul.mubr.bf16.gmra.mrb[0].mxu0 %v174
    %v467 = vpop.f32.mrb[0].mxu0
    %v468 = vadd.f32 %v256, %v467
    %v469 = vpop.f32.mrb[0].mxu0
    %v470 = vadd.f32 %v260, %v469
    %v471 = vpop.f32.mrb[0].mxu0
    %v472 = vadd.f32 %v256, %v471
    %v473 = vpop.f32.mrb[0].mxu0
    %v474 = vadd.f32 %v260, %v473
    %475 = vmatprep.mubr.bf16.mxu0 %v177
    %476 = vmatmul.mubr.bf16.gmra.mrb[0].mxu0 %v176
    %v477 = vpop.f32.mrb[0].mxu0
    %v478 = vadd.f32 %v256, %v477
    %v479 = vpop.f32.mrb[0].mxu0
    %v480 = vadd.f32 %v260, %v479
    %v481 = vpop.f32.mrb[0].mxu0
    %v482 = vadd.f32 %v256, %v481
    %v483 = vpop.f32.mrb[0].mxu0
    %v484 = vadd.f32 %v260, %v483
    %485 = vmatprep.mubr.bf16.mxu0 %v179
    %486 = vmatmul.mubr.bf16.gmra.mrb[0].mxu0 %v178
    %v487 = vpop.f32.mrb[0].mxu0
    %v488 = vadd.f32 %v256, %v487
    %v489 = vpop.f32.mrb[0].mxu0
    %v490 = vadd.f32 %v260, %v489
    %v491 = vpop.f32.mrb[0].mxu0
    %v492 = vadd.f32 %v256, %v491
    %v493 = vpop.f32.mrb[0].mxu0
    %v494 = vadd.f32 %v260, %v493
    %495 = vmatprep.mubr.bf16.mxu0 %v181
    %496 = vmatmul.mubr.bf16.gmra.mrb[0].mxu0 %v180
    %v497 = vpop.f32.mrb[0].mxu0
    %v498 = vadd.f32 %v256, %v497
    %v499 = vpop.f32.mrb[0].mxu0
    %v500 = vadd.f32 %v260, %v499
    %v501 = vpop.f32.mrb[0].mxu0
    %v502 = vadd.f32 %v256, %v501
    %v503 = vpop.f32.mrb[0].mxu0
    %v504 = vadd.f32 %v260, %v503
    %505 = vmatprep.mubr.bf16.mxu0 %v183
    %506 = vmatmul.mubr.bf16.gmra.mrb[0].mxu0 %v182
    %v507 = vpop.f32.mrb[0].mxu0
    %v508 = vadd.f32 %v256, %v507
    %v509 = vpop.f32.mrb[0].mxu0
    %v510 = vadd.f32 %v260, %v509
    %v511 = vpop.f32.mrb[0].mxu0
    %v512 = vadd.f32 %v256, %v511
    %v513 = vpop.f32.mrb[0].mxu0
    %v514 = vadd.f32 %v260, %v513
    %515 = vmatprep.mubr.bf16.mxu0 %v185
    %516 = vmatmul.mubr.bf16.gmra.mrb[0].mxu0 %v184
    %v517 = vpop.f32.mrb[0].mxu0
    %v518 = vadd.f32 %v256, %v517
    %v519 = vpop.f32.mrb[0].mxu0
    %v520 = vadd.f32 %v260, %v519
    %v521 = vpop.f32.mrb[0].mxu0
    %v522 = vadd.f32 %v256, %v521
    %v523 = vpop.f32.mrb[0].mxu0
    %v524 = vadd.f32 %v260, %v523
    %525 = vmatprep.mubr.bf16.mxu0 %v187
    %526 = vmatmul.mubr.bf16.gmra.mrb[0].mxu0 %v186
    %v527 = vpop.f32.mrb[0].mxu0
    %v528 = vadd.f32 %v256, %v527
    %v529 = vpop.f32.mrb[0].mxu0
    %v530 = vadd.f32 %v260, %v529
    %v531 = vpop.f32.mrb[0].mxu0
    %v532 = vadd.f32 %v256, %v531
    %v533 = vpop.f32.mrb[0].mxu0
    %v534 = vadd.f32 %v260, %v533
    %535 = vmatprep.mubr.bf16.mxu0 %v189
    %536 = vmatmul.mubr.bf16.gmra.mrb[0].mxu0 %v188
    %v537 = vpop.f32.mrb[0].mxu0
    %v538 = vadd.f32 %v256, %v537
    %v539 = vpop.f32.mrb[0].mxu0
    %v540 = vadd.f32 %v260, %v539
    %v541 = vpop.f32.mrb[0].mxu0
    %v542 = vadd.f32 %v256, %v541
    %v543 = vpop.f32.mrb[0].mxu0
    %v544 = vadd.f32 %v260, %v543
    %545 = vmatprep.mubr.bf16.mxu0 %v191
    %546 = vmatmul.mubr.bf16.gmra.mrb[0].mxu0 %v190
    %v547 = vpop.f32.mrb[0].mxu0
    %v548 = vadd.f32 %v256, %v547
    %v549 = vpop.f32.mrb[0].mxu0
    %v550 = vadd.f32 %v260, %v549
    %v551 = vpop.f32.mrb[0].mxu0
    %v552 = vadd.f32 %v256, %v551
    %v553 = vpop.f32.mrb[0].mxu0
    %v554 = vadd.f32 %v260, %v553
    %555 = vmatprep.mubr.bf16.mxu0 %v193
    %556 = vmatmul.mubr.bf16.gmra.mrb[0].mxu0 %v192
    %v557 = vpop.f32.mrb[0].mxu0
    %v558 = vadd.f32 %v256, %v557
    %v559 = vpop.f32.mrb[0].mxu0
    %v560 = vadd.f32 %v260, %v559
    %v561 = vpop.f32.mrb[0].mxu0
    %v562 = vadd.f32 %v256, %v561
    %v563 = vpop.f32.mrb[0].mxu0
    %v564 = vadd.f32 %v260, %v563
    %565 = vmatprep.mubr.bf16.mxu0 %v195
    %566 = vmatmul.mubr.bf16.gmra.mrb[0].mxu0 %v194
    %v567 = vpop.f32.mrb[0].mxu0
    %v568 = vadd.f32 %v256, %v567
    %v569 = vpop.f32.mrb[0].mxu0
    %v570 = vadd.f32 %v260, %v569
    %v571 = vpop.f32.mrb[0].mxu0
    %v572 = vadd.f32 %v256, %v571
    %v573 = vpop.f32.mrb[0].mxu0
    %v574 = vadd.f32 %v260, %v573
    %575 = vmatprep.mubr.bf16.mxu0 %v197
    %576 = vmatmul.mubr.bf16.gmra.mrb[0].mxu0 %v196
    %v577 = vpop.f32.mrb[0].mxu0
    %v578 = vadd.f32 %v256, %v577
    %v579 = vpop.f32.mrb[0].mxu0
    %v580 = vadd.f32 %v260, %v579
    %v581 = vpop.f32.mrb[0].mxu0
    %v582 = vadd.f32 %v256, %v581
    %v583 = vpop.f32.mrb[0].mxu0
    %v584 = vadd.f32 %v260, %v583
    %585 = vmatprep.mubr.bf16.mxu0 %v199
    %586 = vmatmul.mubr.bf16.gmra.mrb[0].mxu0 %v198
    %v587 = vpop.f32.mrb[0].mxu0
    %v588 = vadd.f32 %v256, %v587
    %v589 = vpop.f32.mrb[0].mxu0
    %v590 = vadd.f32 %v260, %v589
    %v591 = vpop.f32.mrb[0].mxu0
    %v592 = vadd.f32 %v256, %v591
    %v593 = vpop.f32.mrb[0].mxu0
    %v594 = vadd.f32 %v260, %v593
    %595 = vmatprep.mubr.bf16.mxu0 %v201
    %596 = vmatmul.mubr.bf16.gmra.mrb[0].mxu0 %v200
    %v597 = vpop.f32.mrb[0].mxu0
    %v598 = vadd.f32 %v256, %v597
    %v599 = vpop.f32.mrb[0].mxu0
    %v600 = vadd.f32 %v260, %v599
    %v601 = vpop.f32.mrb[0].mxu0
    %v602 = vadd.f32 %v256, %v601
    %v603 = vpop.f32.mrb[0].mxu0
    %v604 = vadd.f32 %v260, %v603
    %605 = vmatprep.mubr.bf16.mxu0 %v203
    %606 = vmatmul.mubr.bf16.gmra.mrb[0].mxu0 %v202
    %v607 = vpop.f32.mrb[0].mxu0
    %v608 = vadd.f32 %v256, %v607
    %v609 = vpop.f32.mrb[0].mxu0
    %v610 = vadd.f32 %v260, %v609
    %v611 = vpop.f32.mrb[0].mxu0
    %v612 = vadd.f32 %v256, %v611
    %v613 = vpop.f32.mrb[0].mxu0
    %v614 = vadd.f32 %v260, %v613
    %615 = vmatprep.mubr.bf16.mxu0 %v205
    %616 = vmatmul.mubr.bf16.gmra.mrb[0].mxu0 %v204
    %v617 = vpop.f32.mrb[0].mxu0
    %v618 = vadd.f32 %v256, %v617
    %v619 = vpop.f32.mrb[0].mxu0
    %v620 = vadd.f32 %v260, %v619
    %v621 = vpop.f32.mrb[0].mxu0
    %v622 = vadd.f32 %v256, %v621
    %v623 = vpop.f32.mrb[0].mxu0
    %v624 = vadd.f32 %v260, %v623
    %625 = vmatprep.mubr.bf16.mxu0 %v207
    %626 = vmatmul.mubr.bf16.gmra.mrb[0].mxu0 %v206
    %v627 = vpop.f32.mrb[0].mxu0
    %v628 = vadd.f32 %v256, %v627
    %v629 = vpop.f32.mrb[0].mxu0
    %v630 = vadd.f32 %v260, %v629
    %v631 = vpop.f32.mrb[0].mxu0
    %v632 = vadd.f32 %v256, %v631
    %v633 = vpop.f32.mrb[0].mxu0
    %v634 = vadd.f32 %v260, %v633
    %635 = vmatprep.mubr.bf16.mxu0 %v209
    %636 = vmatmul.mubr.bf16.gmra.mrb[0].mxu0 %v208
    %v637 = vpop.f32.mrb[0].mxu0
    %v638 = vadd.f32 %v256, %v637
    %v639 = vpop.f32.mrb[0].mxu0
    %v640 = vadd.f32 %v260, %v639
    %v641 = vpop.f32.mrb[0].mxu0
    %v642 = vadd.f32 %v256, %v641
    %v643 = vpop.f32.mrb[0].mxu0
    %v644 = vadd.f32 %v260, %v643
    %645 = vmatprep.mubr.bf16.mxu0 %v211
    %646 = vmatmul.mubr.bf16.gmra.mrb[0].mxu0 %v210
    %v647 = vpop.f32.mrb[0].mxu0
    %v648 = vadd.f32 %v256, %v647
    %v649 = vpop.f32.mrb[0].mxu0
    %v650 = vadd.f32 %v260, %v649
    %v651 = vpop.f32.mrb[0].mxu0
    %v652 = vadd.f32 %v256, %v651
    %v653 = vpop.f32.mrb[0].mxu0
    %v654 = vadd.f32 %v260, %v653
    %655 = vmatprep.mubr.bf16.mxu0 %v213
    %656 = vmatmul.mubr.bf16.gmra.mrb[0].mxu0 %v212
    %v657 = vpop.f32.mrb[0].mxu0
    %v658 = vadd.f32 %v256, %v657
    %v659 = vpop.f32.mrb[0].mxu0
    %v660 = vadd.f32 %v260, %v659
    %v661 = vpop.f32.mrb[0].mxu0
    %v662 = vadd.f32 %v256, %v661
    %v663 = vpop.f32.mrb[0].mxu0
    %v664 = vadd.f32 %v260, %v663
    %665 = vmatprep.mubr.bf16.mxu0 %v215
    %666 = vmatmul.mubr.bf16.gmra.mrb[0].mxu0 %v214
    %v667 = vpop.f32.mrb[0].mxu0
    %v668 = vadd.f32 %v256, %v667
    %v669 = vpop.f32.mrb[0].mxu0
    %v670 = vadd.f32 %v260, %v669
    %v671 = vpop.f32.mrb[0].mxu0
    %v672 = vadd.f32 %v256, %v671
    %v673 = vpop.f32.mrb[0].mxu0
    %v674 = vadd.f32 %v260, %v673
    %675 = vmatprep.mubr.bf16.mxu0 %v217
    %676 = vmatmul.mubr.bf16.gmra.mrb[0].mxu0 %v216
    %v677 = vpop.f32.mrb[0].mxu0
    %v678 = vadd.f32 %v256, %v677
    %v679 = vpop.f32.mrb[0].mxu0
    %v680 = vadd.f32 %v260, %v679
    %v681 = vpop.f32.mrb[0].mxu0
    %v682 = vadd.f32 %v256, %v681
    %v683 = vpop.f32.mrb[0].mxu0
    %v684 = vadd.f32 %v260, %v683
    %685 = vmatprep.mubr.bf16.mxu0 %v219
    %686 = vmatmul.mubr.bf16.gmra.mrb[0].mxu0 %v218
    %v687 = vpop.f32.mrb[0].mxu0
    %v688 = vadd.f32 %v256, %v687
    %v689 = vpop.f32.mrb[0].mxu0
    %v690 = vadd.f32 %v260, %v689
    %v691 = vpop.f32.mrb[0].mxu0
    %v692 = vadd.f32 %v256, %v691
    %v693 = vpop.f32.mrb[0].mxu0
    %v694 = vadd.f32 %v260, %v693
    %695 = vdwg.mxu0
    %v696 = vld [vmem:[#allocation8] sm:$0xff]
    %v697 = vld [vmem:[#allocation8 + $0x8] sm:$0xff]
    %v698 = vld [vmem:[#allocation8 + $0x10] sm:$0xff]
    %v699 = vld [vmem:[#allocation8 + $0x18] sm:$0xff]
    %v700 = vld [vmem:[#allocation8 + $0x20] sm:$0xff]
    %v701 = vld [vmem:[#allocation8 + $0x28] sm:$0xff]
    %v702 = vld [vmem:[#allocation8 + $0x30] sm:$0xff]
    %v703 = vld [vmem:[#allocation8 + $0x38] sm:$0xff]
    %v704 = vld [vmem:[#allocation8 + $0x40] sm:$0xff]
    %v705 = vld [vmem:[#allocation8 + $0x48] sm:$0xff]
    %v706 = vld [vmem:[#allocation8 + $0x50] sm:$0xff]
    %v707 = vld [vmem:[#allocation8 + $0x58] sm:$0xff]
    %v708 = vld [vmem:[#allocation8 + $0x60] sm:$0xff]
    %v709 = vld [vmem:[#allocation8 + $0x68] sm:$0xff]
    %v710 = vld [vmem:[#allocation8 + $0x70] sm:$0xff]
    %v711 = vld [vmem:[#allocation8 + $0x78] sm:$0xff]
    %v712 = vld [vmem:[#allocation8 + $0x80] sm:$0xff]
    %v713 = vld [vmem:[#allocation8 + $0x88] sm:$0xff]
    %v714 = vld [vmem:[#allocation8 + $0x90] sm:$0xff]
    %v715 = vld [vmem:[#allocation8 + $0x98] sm:$0xff]
    %v716 = vld [vmem:[#allocation8 + $0xa0] sm:$0xff]
    %v717 = vld [vmem:[#allocation8 + $0xa8] sm:$0xff]
    %v718 = vld [vmem:[#allocation8 + $0xb0] sm:$0xff]
    %v719 = vld [vmem:[#allocation8 + $0xb8] sm:$0xff]
    %v720 = vld [vmem:[#allocation8 + $0xc0] sm:$0xff]
    %v721 = vld [vmem:[#allocation8 + $0xc8] sm:$0xff]
    %v722 = vld [vmem:[#allocation8 + $0xd0] sm:$0xff]
    %v723 = vld [vmem:[#allocation8 + $0xd8] sm:$0xff]
    %v724 = vld [vmem:[#allocation8 + $0xe0] sm:$0xff]
    %v725 = vld [vmem:[#allocation8 + $0xe8] sm:$0xff]
    %v726 = vld [vmem:[#allocation8 + $0xf0] sm:$0xff]
    %v727 = vld [vmem:[#allocation8 + $0xf8] sm:$0xff]
    %v728 = vld [vmem:[#allocation8 + $0x100] sm:$0xff]
    %v729 = vld [vmem:[#allocation8 + $0x108] sm:$0xff]
    %v730 = vld [vmem:[#allocation8 + $0x110] sm:$0xff]
    %v731 = vld [vmem:[#allocation8 + $0x118] sm:$0xff]
    %v732 = vld [vmem:[#allocation8 + $0x120] sm:$0xff]
    %v733 = vld [vmem:[#allocation8 + $0x128] sm:$0xff]
    %v734 = vld [vmem:[#allocation8 + $0x130] sm:$0xff]
    %v735 = vld [vmem:[#allocation8 + $0x138] sm:$0xff]
    %v736 = vld [vmem:[#allocation8 + $0x140] sm:$0xff]
    %v737 = vld [vmem:[#allocation8 + $0x148] sm:$0xff]
    %v738 = vld [vmem:[#allocation8 + $0x150] sm:$0xff]
    %v739 = vld [vmem:[#allocation8 + $0x158] sm:$0xff]
    %v740 = vld [vmem:[#allocation8 + $0x160] sm:$0xff]
    %v741 = vld [vmem:[#allocation8 + $0x168] sm:$0xff]
    %v742 = vld [vmem:[#allocation8 + $0x170] sm:$0xff]
    %v743 = vld [vmem:[#allocation8 + $0x178] sm:$0xff]
    %v744 = vld [vmem:[#allocation8 + $0x180] sm:$0xff]
    %v745 = vld [vmem:[#allocation8 + $0x188] sm:$0xff]
    %v746 = vld [vmem:[#allocation8 + $0x190] sm:$0xff]
    %v747 = vld [vmem:[#allocation8 + $0x198] sm:$0xff]
    %v748 = vld [vmem:[#allocation8 + $0x1a0] sm:$0xff]
    %v749 = vld [vmem:[#allocation8 + $0x1a8] sm:$0xff]
    %v750 = vld [vmem:[#allocation8 + $0x1b0] sm:$0xff]
    %v751 = vld [vmem:[#allocation8 + $0x1b8] sm:$0xff]
    %v752 = vld [vmem:[#allocation8 + $0x1c0] sm:$0xff]
    %v753 = vld [vmem:[#allocation8 + $0x1c8] sm:$0xff]
    %v754 = vld [vmem:[#allocation8 + $0x1d0] sm:$0xff]
    %v755 = vld [vmem:[#allocation8 + $0x1d8] sm:$0xff]
    %v756 = vld [vmem:[#allocation8 + $0x1e0] sm:$0xff]
    %v757 = vld [vmem:[#allocation8 + $0x1e8] sm:$0xff]
    %v758 = vld [vmem:[#allocation8 + $0x1f0] sm:$0xff]
    %v759 = vld [vmem:[#allocation8 + $0x1f8] sm:$0xff]
    %v760 = vld [vmem:[#allocation8 + $0x200] sm:$0xff]
    %v761 = vld [vmem:[#allocation8 + $0x208] sm:$0xff]
    %v762 = vld [vmem:[#allocation8 + $0x210] sm:$0xff]
    %v763 = vld [vmem:[#allocation8 + $0x218] sm:$0xff]
    %v764 = vld [vmem:[#allocation8 + $0x220] sm:$0xff]
    %v765 = vld [vmem:[#allocation8 + $0x228] sm:$0xff]
    %v766 = vld [vmem:[#allocation8 + $0x230] sm:$0xff]
    %v767 = vld [vmem:[#allocation8 + $0x238] sm:$0xff]
    %v768 = vld [vmem:[#allocation8 + $0x240] sm:$0xff]
    %v769 = vld [vmem:[#allocation8 + $0x248] sm:$0xff]
    %v770 = vld [vmem:[#allocation8 + $0x250] sm:$0xff]
    %v771 = vld [vmem:[#allocation8 + $0x258] sm:$0xff]
    %v772 = vld [vmem:[#allocation8 + $0x260] sm:$0xff]
    %v773 = vld [vmem:[#allocation8 + $0x268] sm:$0xff]
    %v774 = vld [vmem:[#allocation8 + $0x270] sm:$0xff]
    %v775 = vld [vmem:[#allocation8 + $0x278] sm:$0xff]
    %v776 = vld [vmem:[#allocation8 + $0x280] sm:$0xff]
    %v777 = vld [vmem:[#allocation8 + $0x288] sm:$0xff]
    %v778 = vld [vmem:[#allocation8 + $0x290] sm:$0xff]
    %v779 = vld [vmem:[#allocation8 + $0x298] sm:$0xff]
    %v780 = vld [vmem:[#allocation8 + $0x2a0] sm:$0xff]
    %v781 = vld [vmem:[#allocation8 + $0x2a8] sm:$0xff]
    %v782 = vld [vmem:[#allocation8 + $0x2b0] sm:$0xff]
    %v783 = vld [vmem:[#allocation8 + $0x2b8] sm:$0xff]
    %v784 = vld [vmem:[#allocation8 + $0x2c0] sm:$0xff]
    %v785 = vld [vmem:[#allocation8 + $0x2c8] sm:$0xff]
    %v786 = vld [vmem:[#allocation8 + $0x2d0] sm:$0xff]
    %v787 = vld [vmem:[#allocation8 + $0x2d8] sm:$0xff]
    %v788 = vld [vmem:[#allocation8 + $0x2e0] sm:$0xff]
    %v789 = vld [vmem:[#allocation8 + $0x2e8] sm:$0xff]
    %v790 = vld [vmem:[#allocation8 + $0x2f0] sm:$0xff]
    %v791 = vld [vmem:[#allocation8 + $0x2f8] sm:$0xff]
    %v792 = vadd.f32 %v458, %v696
    %v793 = vadd.f32 %v460, %v697
    %v794 = vadd.f32 %v462, %v698
    %v795 = vadd.f32 %v464, %v699
    %v796 = vadd.f32 %v468, %v700
    %v797 = vadd.f32 %v470, %v701
    %v798 = vadd.f32 %v472, %v702
    %v799 = vadd.f32 %v474, %v703
    %v800 = vadd.f32 %v478, %v704
    %v801 = vadd.f32 %v480, %v705
    %v802 = vadd.f32 %v482, %v706
    %v803 = vadd.f32 %v484, %v707
    %v804 = vadd.f32 %v488, %v708
    %v805 = vadd.f32 %v490, %v709
    %v806 = vadd.f32 %v492, %v710
    %v807 = vadd.f32 %v494, %v711
    %v808 = vadd.f32 %v498, %v712
    %v809 = vadd.f32 %v500, %v713
    %v810 = vadd.f32 %v502, %v714
    %v811 = vadd.f32 %v504, %v715
    %v812 = vadd.f32 %v508, %v716
    %v813 = vadd.f32 %v510, %v717
    %v814 = vadd.f32 %v512, %v718
    %v815 = vadd.f32 %v514, %v719
    %v816 = vadd.f32 %v518, %v720
    %v817 = vadd.f32 %v520, %v721
    %v818 = vadd.f32 %v522, %v722
    %v819 = vadd.f32 %v524, %v723
    %v820 = vadd.f32 %v528, %v724
    %v821 = vadd.f32 %v530, %v725
    %v822 = vadd.f32 %v532, %v726
    %v823 = vadd.f32 %v534, %v727
    %v824 = vadd.f32 %v538, %v728
    %v825 = vadd.f32 %v540, %v729
    %v826 = vadd.f32 %v542, %v730
    %v827 = vadd.f32 %v544, %v731
    %v828 = vadd.f32 %v548, %v732
    %v829 = vadd.f32 %v550, %v733
    %v830 = vadd.f32 %v552, %v734
    %v831 = vadd.f32 %v554, %v735
    %v832 = vadd.f32 %v558, %v736
    %v833 = vadd.f32 %v560, %v737
    %v834 = vadd.f32 %v562, %v738
    %v835 = vadd.f32 %v564, %v739
    %v836 = vadd.f32 %v568, %v740
    %v837 = vadd.f32 %v570, %v741
    %v838 = vadd.f32 %v572, %v742
    %v839 = vadd.f32 %v574, %v743
    %v840 = vadd.f32 %v578, %v744
    %v841 = vadd.f32 %v580, %v745
    %v842 = vadd.f32 %v582, %v746
    %v843 = vadd.f32 %v584, %v747
    %v844 = vadd.f32 %v588, %v748
    %v845 = vadd.f32 %v590, %v749
    %v846 = vadd.f32 %v592, %v750
    %v847 = vadd.f32 %v594, %v751
    %v848 = vadd.f32 %v598, %v752
    %v849 = vadd.f32 %v600, %v753
    %v850 = vadd.f32 %v602, %v754
    %v851 = vadd.f32 %v604, %v755
    %v852 = vadd.f32 %v608, %v756
    %v853 = vadd.f32 %v610, %v757
    %v854 = vadd.f32 %v612, %v758
    %v855 = vadd.f32 %v614, %v759
    %v856 = vadd.f32 %v618, %v760
    %v857 = vadd.f32 %v620, %v761
    %v858 = vadd.f32 %v622, %v762
    %v859 = vadd.f32 %v624, %v763
    %v860 = vadd.f32 %v628, %v764
    %v861 = vadd.f32 %v630, %v765
    %v862 = vadd.f32 %v632, %v766
    %v863 = vadd.f32 %v634, %v767
    %v864 = vadd.f32 %v638, %v768
    %v865 = vadd.f32 %v640, %v769
    %v866 = vadd.f32 %v642, %v770
    %v867 = vadd.f32 %v644, %v771
    %v868 = vadd.f32 %v648, %v772
    %v869 = vadd.f32 %v650, %v773
    %v870 = vadd.f32 %v652, %v774
    %v871 = vadd.f32 %v654, %v775
    %v872 = vadd.f32 %v658, %v776
    %v873 = vadd.f32 %v660, %v777
    %v874 = vadd.f32 %v662, %v778
    %v875 = vadd.f32 %v664, %v779
    %v876 = vadd.f32 %v668, %v780
    %v877 = vadd.f32 %v670, %v781
    %v878 = vadd.f32 %v672, %v782
    %v879 = vadd.f32 %v674, %v783
    %v880 = vadd.f32 %v678, %v784
    %v881 = vadd.f32 %v680, %v785
    %v882 = vadd.f32 %v682, %v786
    %v883 = vadd.f32 %v684, %v787
    %v884 = vadd.f32 %v688, %v788
    %v885 = vadd.f32 %v690, %v789
    %v886 = vadd.f32 %v692, %v790
    %v887 = vadd.f32 %v694, %v791
    %v888 = vadd.f32 %v792, %v793
    %889 = vadd.xlane.f32.xlu0 %v888
    %v890 = vpop.xlane.xlu0 %889
    %v891 = vadd.f32 %v794, %v795
    %892 = vadd.xlane.f32.xlu0 %v891
    %v893 = vpop.xlane.xlu0 %892
    %v894 = vadd.f32 %v796, %v797
    %895 = vadd.xlane.f32.xlu0 %v894
    %v896 = vpop.xlane.xlu0 %895
    %v897 = vadd.f32 %v798, %v799
    %898 = vadd.xlane.f32.xlu0 %v897
    %v899 = vpop.xlane.xlu0 %898
    %v900 = vadd.f32 %v800, %v801
    %901 = vadd.xlane.f32.xlu0 %v900
    %v902 = vpop.xlane.xlu0 %901
    %v903 = vadd.f32 %v802, %v803
    %904 = vadd.xlane.f32.xlu0 %v903
    %v905 = vpop.xlane.xlu0 %904
    %v906 = vadd.f32 %v804, %v805
    %907 = vadd.xlane.f32.xlu0 %v906
    %v908 = vpop.xlane.xlu0 %907
    %v909 = vadd.f32 %v806, %v807
    %910 = vadd.xlane.f32.xlu0 %v909
    %v911 = vpop.xlane.xlu0 %910
    %v912 = vadd.f32 %v808, %v809
    %913 = vadd.xlane.f32.xlu0 %v912
    %v914 = vpop.xlane.xlu0 %913
    %v915 = vadd.f32 %v810, %v811
    %916 = vadd.xlane.f32.xlu0 %v915
    %v917 = vpop.xlane.xlu0 %916
    %v918 = vadd.f32 %v812, %v813
    %919 = vadd.xlane.f32.xlu0 %v918
    %v920 = vpop.xlane.xlu0 %919
    %v921 = vadd.f32 %v814, %v815
    %922 = vadd.xlane.f32.xlu0 %v921
    %v923 = vpop.xlane.xlu0 %922
    %v924 = vadd.f32 %v816, %v817
    %925 = vadd.xlane.f32.xlu0 %v924
    %v926 = vpop.xlane.xlu0 %925
    %v927 = vadd.f32 %v818, %v819
    %928 = vadd.xlane.f32.xlu0 %v927
    %v929 = vpop.xlane.xlu0 %928
    %v930 = vadd.f32 %v820, %v821
    %931 = vadd.xlane.f32.xlu0 %v930
    %v932 = vpop.xlane.xlu0 %931
    %v933 = vadd.f32 %v822, %v823
    %934 = vadd.xlane.f32.xlu0 %v933
    %v935 = vpop.xlane.xlu0 %934
    %v936 = vadd.f32 %v824, %v825
    %937 = vadd.xlane.f32.xlu0 %v936
    %v938 = vpop.xlane.xlu0 %937
    %v939 = vadd.f32 %v826, %v827
    %940 = vadd.xlane.f32.xlu0 %v939
    %v941 = vpop.xlane.xlu0 %940
    %v942 = vadd.f32 %v828, %v829
    %943 = vadd.xlane.f32.xlu0 %v942
    %v944 = vpop.xlane.xlu0 %943
    %v945 = vadd.f32 %v830, %v831
    %946 = vadd.xlane.f32.xlu0 %v945
    %v947 = vpop.xlane.xlu0 %946
    %v948 = vadd.f32 %v832, %v833
    %949 = vadd.xlane.f32.xlu0 %v948
    %v950 = vpop.xlane.xlu0 %949
    %v951 = vadd.f32 %v834, %v835
    %952 = vadd.xlane.f32.xlu0 %v951
    %v953 = vpop.xlane.xlu0 %952
    %v954 = vadd.f32 %v836, %v837
    %955 = vadd.xlane.f32.xlu0 %v954
    %v956 = vpop.xlane.xlu0 %955
    %v957 = vadd.f32 %v838, %v839
    %958 = vadd.xlane.f32.xlu0 %v957
    %v959 = vpop.xlane.xlu0 %958
    %v960 = vadd.f32 %v840, %v841
    %961 = vadd.xlane.f32.xlu0 %v960
    %v962 = vpop.xlane.xlu0 %961
    %v963 = vadd.f32 %v842, %v843
    %964 = vadd.xlane.f32.xlu0 %v963
    %v965 = vpop.xlane.xlu0 %964
    %v966 = vadd.f32 %v844, %v845
    %967 = vadd.xlane.f32.xlu0 %v966
    %v968 = vpop.xlane.xlu0 %967
    %v969 = vadd.f32 %v846, %v847
    %970 = vadd.xlane.f32.xlu0 %v969
    %v971 = vpop.xlane.xlu0 %970
    %v972 = vadd.f32 %v848, %v849
    %973 = vadd.xlane.f32.xlu0 %v972
    %v974 = vpop.xlane.xlu0 %973
    %v975 = vadd.f32 %v850, %v851
    %976 = vadd.xlane.f32.xlu0 %v975
    %v977 = vpop.xlane.xlu0 %976
    %v978 = vadd.f32 %v852, %v853
    %979 = vadd.xlane.f32.xlu0 %v978
    %v980 = vpop.xlane.xlu0 %979
    %v981 = vadd.f32 %v854, %v855
    %982 = vadd.xlane.f32.xlu0 %v981
    %v983 = vpop.xlane.xlu0 %982
    %v984 = vadd.f32 %v856, %v857
    %985 = vadd.xlane.f32.xlu0 %v984
    %v986 = vpop.xlane.xlu0 %985
    %v987 = vadd.f32 %v858, %v859
    %988 = vadd.xlane.f32.xlu0 %v987
    %v989 = vpop.xlane.xlu0 %988
    %v990 = vadd.f32 %v860, %v861
    %991 = vadd.xlane.f32.xlu0 %v990
    %v992 = vpop.xlane.xlu0 %991
    %v993 = vadd.f32 %v862, %v863
    %994 = vadd.xlane.f32.xlu0 %v993
    %v995 = vpop.xlane.xlu0 %994
    %v996 = vadd.f32 %v864, %v865
    %997 = vadd.xlane.f32.xlu0 %v996
    %v998 = vpop.xlane.xlu0 %997
    %v999 = vadd.f32 %v866, %v867
    %1000 = vadd.xlane.f32.xlu0 %v999
    %v1001 = vpop.xlane.xlu0 %1000
    %v1002 = vadd.f32 %v868, %v869
    %1003 = vadd.xlane.f32.xlu0 %v1002
    %v1004 = vpop.xlane.xlu0 %1003
    %v1005 = vadd.f32 %v870, %v871
    %1006 = vadd.xlane.f32.xlu0 %v1005
    %v1007 = vpop.xlane.xlu0 %1006
    %v1008 = vadd.f32 %v872, %v873
    %1009 = vadd.xlane.f32.xlu0 %v1008
    %v1010 = vpop.xlane.xlu0 %1009
    %v1011 = vadd.f32 %v874, %v875
    %1012 = vadd.xlane.f32.xlu0 %v1011
    %v1013 = vpop.xlane.xlu0 %1012
    %v1014 = vadd.f32 %v876, %v877
    %1015 = vadd.xlane.f32.xlu0 %v1014
    %v1016 = vpop.xlane.xlu0 %1015
    %v1017 = vadd.f32 %v878, %v879
    %1018 = vadd.xlane.f32.xlu0 %v1017
    %v1019 = vpop.xlane.xlu0 %1018
    %v1020 = vadd.f32 %v880, %v881
    %1021 = vadd.xlane.f32.xlu0 %v1020
    %v1022 = vpop.xlane.xlu0 %1021
    %v1023 = vadd.f32 %v882, %v883
    %1024 = vadd.xlane.f32.xlu0 %v1023
    %v1025 = vpop.xlane.xlu0 %1024
    %v1026 = vadd.f32 %v884, %v885
    %1027 = vadd.xlane.f32.xlu0 %v1026
    %v1028 = vpop.xlane.xlu0 %1027
    %v1029 = vadd.f32 %v886, %v887
    %1030 = vadd.xlane.f32.xlu0 %v1029
    %v1031 = vpop.xlane.xlu0 %1030
    %v1032 = vrcp.pop 256.0
    %v1033 = vmul.f32 %v890, %v1032
    %v1034 = vmul.f32 %v893, %v1032
    %v1035 = vmul.f32 %v896, %v1032
    %v1036 = vmul.f32 %v899, %v1032
    %v1037 = vmul.f32 %v902, %v1032
    %v1038 = vmul.f32 %v905, %v1032
    %v1039 = vmul.f32 %v908, %v1032
    %v1040 = vmul.f32 %v911, %v1032
    %v1041 = vmul.f32 %v914, %v1032
    %v1042 = vmul.f32 %v917, %v1032
    %v1043 = vmul.f32 %v920, %v1032
    %v1044 = vmul.f32 %v923, %v1032
    %v1045 = vmul.f32 %v926, %v1032
    %v1046 = vmul.f32 %v929, %v1032
    %v1047 = vmul.f32 %v932, %v1032
    %v1048 = vmul.f32 %v935, %v1032
    %v1049 = vmul.f32 %v938, %v1032
    %v1050 = vmul.f32 %v941, %v1032
    %v1051 = vmul.f32 %v944, %v1032
    %v1052 = vmul.f32 %v947, %v1032
    %v1053 = vmul.f32 %v950, %v1032
    %v1054 = vmul.f32 %v953, %v1032
    %v1055 = vmul.f32 %v956, %v1032
    %v1056 = vmul.f32 %v959, %v1032
    %v1057 = vmul.f32 %v962, %v1032
    %v1058 = vmul.f32 %v965, %v1032
    %v1059 = vmul.f32 %v968, %v1032
    %v1060 = vmul.f32 %v971, %v1032
    %v1061 = vmul.f32 %v974, %v1032
    %v1062 = vmul.f32 %v977, %v1032
    %v1063 = vmul.f32 %v980, %v1032
    %v1064 = vmul.f32 %v983, %v1032
    %v1065 = vmul.f32 %v986, %v1032
    %v1066 = vmul.f32 %v989, %v1032
    %v1067 = vmul.f32 %v992, %v1032
    %v1068 = vmul.f32 %v995, %v1032
    %v1069 = vmul.f32 %v998, %v1032
    %v1070 = vmul.f32 %v1001, %v1032
    %v1071 = vmul.f32 %v1004, %v1032
    %v1072 = vmul.f32 %v1007, %v1032
    %v1073 = vmul.f32 %v1010, %v1032
    %v1074 = vmul.f32 %v1013, %v1032
    %v1075 = vmul.f32 %v1016, %v1032
    %v1076 = vmul.f32 %v1019, %v1032
    %v1077 = vmul.f32 %v1022, %v1032
    %v1078 = vmul.f32 %v1025, %v1032
    %v1079 = vmul.f32 %v1028, %v1032
    %v1080 = vmul.f32 %v1031, %v1032
    %v1081 = vmul.f32 %v792, %v792
    %v1082 = vmul.f32 %v793, %v793
    %v1083 = vmul.f32 %v794, %v794
    %v1084 = vmul.f32 %v795, %v795
    %v1085 = vmul.f32 %v796, %v796
    %v1086 = vmul.f32 %v797, %v797
    %v1087 = vmul.f32 %v798, %v798
    %v1088 = vmul.f32 %v799, %v799
    %v1089 = vmul.f32 %v800, %v800
    %v1090 = vmul.f32 %v801, %v801
    %v1091 = vmul.f32 %v802, %v802
    %v1092 = vmul.f32 %v803, %v803
    %v1093 = vmul.f32 %v804, %v804
    %v1094 = vmul.f32 %v805, %v805
    %v1095 = vmul.f32 %v806, %v806
    %v1096 = vmul.f32 %v807, %v807
    %v1097 = vmul.f32 %v808, %v808
    %v1098 = vmul.f32 %v809, %v809
    %v1099 = vmul.f32 %v810, %v810
    %v1100 = vmul.f32 %v811, %v811
    %v1101 = vmul.f32 %v812, %v812
    %v1102 = vmul.f32 %v813, %v813
    %v1103 = vmul.f32 %v814, %v814
    %v1104 = vmul.f32 %v815, %v815
    %v1105 = vmul.f32 %v816, %v816
    %v1106 = vmul.f32 %v817, %v817
    %v1107 = vmul.f32 %v818, %v818
    %v1108 = vmul.f32 %v819, %v819
    %v1109 = vmul.f32 %v820, %v820
    %v1110 = vmul.f32 %v821, %v821
    %v1111 = vmul.f32 %v822, %v822
    %v1112 = vmul.f32 %v823, %v823
    %v1113 = vmul.f32 %v824, %v824
    %v1114 = vmul.f32 %v825, %v825
    %v1115 = vmul.f32 %v826, %v826
    %v1116 = vmul.f32 %v827, %v827
    %v1117 = vmul.f32 %v828, %v828
    %v1118 = vmul.f32 %v829, %v829
    %v1119 = vmul.f32 %v830, %v830
    %v1120 = vmul.f32 %v831, %v831
    %v1121 = vmul.f32 %v832, %v832
    %v1122 = vmul.f32 %v833, %v833
    %v1123 = vmul.f32 %v834, %v834
    %v1124 = vmul.f32 %v835, %v835
    %v1125 = vmul.f32 %v836, %v836
    %v1126 = vmul.f32 %v837, %v837
    %v1127 = vmul.f32 %v838, %v838
    %v1128 = vmul.f32 %v839, %v839
    %v1129 = vmul.f32 %v840, %v840
    %v1130 = vmul.f32 %v841, %v841
    %v1131 = vmul.f32 %v842, %v842
    %v1132 = vmul.f32 %v843, %v843
    %v1133 = vmul.f32 %v844, %v844
    %v1134 = vmul.f32 %v845, %v845
    %v1135 = vmul.f32 %v846, %v846
    %v1136 = vmul.f32 %v847, %v847
    %v1137 = vmul.f32 %v848, %v848
    %v1138 = vmul.f32 %v849, %v849
    %v1139 = vmul.f32 %v850, %v850
    %v1140 = vmul.f32 %v851, %v851
    %v1141 = vmul.f32 %v852, %v852
    %v1142 = vmul.f32 %v853, %v853
    %v1143 = vmul.f32 %v854, %v854
    %v1144 = vmul.f32 %v855, %v855
    %v1145 = vmul.f32 %v856, %v856
    %v1146 = vmul.f32 %v857, %v857
    %v1147 = vmul.f32 %v858, %v858
    %v1148 = vmul.f32 %v859, %v859
    %v1149 = vmul.f32 %v860, %v860
    %v1150 = vmul.f32 %v861, %v861
    %v1151 = vmul.f32 %v862, %v862
    %v1152 = vmul.f32 %v863, %v863
    %v1153 = vmul.f32 %v864, %v864
    %v1154 = vmul.f32 %v865, %v865
    %v1155 = vmul.f32 %v866, %v866
    %v1156 = vmul.f32 %v867, %v867
    %v1157 = vmul.f32 %v868, %v868
    %v1158 = vmul.f32 %v869, %v869
    %v1159 = vmul.f32 %v870, %v870
    %v1160 = vmul.f32 %v871, %v871
    %v1161 = vmul.f32 %v872, %v872
    %v1162 = vmul.f32 %v873, %v873
    %v1163 = vmul.f32 %v874, %v874
    %v1164 = vmul.f32 %v875, %v875
    %v1165 = vmul.f32 %v876, %v876
    %v1166 = vmul.f32 %v877, %v877
    %v1167 = vmul.f32 %v878, %v878
    %v1168 = vmul.f32 %v879, %v879
    %v1169 = vmul.f32 %v880, %v880
    %v1170 = vmul.f32 %v881, %v881
    %v1171 = vmul.f32 %v882, %v882
    %v1172 = vmul.f32 %v883, %v883
    %v1173 = vmul.f32 %v884, %v884
    %v1174 = vmul.f32 %v885, %v885
    %v1175 = vmul.f32 %v886, %v886
    %v1176 = vmul.f32 %v887, %v887
    %v1177 = vadd.f32 %v1081, %v1082
    %1178 = vadd.xlane.f32.xlu0 %v1177
    %v1179 = vpop.xlane.xlu0 %1178
    %v1180 = vadd.f32 %v1083, %v1084
    %1181 = vadd.xlane.f32.xlu0 %v1180
    %v1182 = vpop.xlane.xlu0 %1181
    %v1183 = vadd.f32 %v1085, %v1086
    %1184 = vadd.xlane.f32.xlu0 %v1183
    %v1185 = vpop.xlane.xlu0 %1184
    %v1186 = vadd.f32 %v1087, %v1088
    %1187 = vadd.xlane.f32.xlu0 %v1186
    %v1188 = vpop.xlane.xlu0 %1187
    %v1189 = vadd.f32 %v1089, %v1090
    %1190 = vadd.xlane.f32.xlu0 %v1189
    %v1191 = vpop.xlane.xlu0 %1190
    %v1192 = vadd.f32 %v1091, %v1092
    %1193 = vadd.xlane.f32.xlu0 %v1192
    %v1194 = vpop.xlane.xlu0 %1193
    %v1195 = vadd.f32 %v1093, %v1094
    %1196 = vadd.xlane.f32.xlu0 %v1195
    %v1197 = vpop.xlane.xlu0 %1196
    %v1198 = vadd.f32 %v1095, %v1096
    %1199 = vadd.xlane.f32.xlu0 %v1198
    %v1200 = vpop.xlane.xlu0 %1199
    %v1201 = vadd.f32 %v1097, %v1098
    %1202 = vadd.xlane.f32.xlu0 %v1201
    %v1203 = vpop.xlane.xlu0 %1202
    %v1204 = vadd.f32 %v1099, %v1100
    %1205 = vadd.xlane.f32.xlu0 %v1204
    %v1206 = vpop.xlane.xlu0 %1205
    %v1207 = vadd.f32 %v1101, %v1102
    %1208 = vadd.xlane.f32.xlu0 %v1207
    %v1209 = vpop.xlane.xlu0 %1208
    %v1210 = vadd.f32 %v1103, %v1104
    %1211 = vadd.xlane.f32.xlu0 %v1210
    %v1212 = vpop.xlane.xlu0 %1211
    %v1213 = vadd.f32 %v1105, %v1106
    %1214 = vadd.xlane.f32.xlu0 %v1213
    %v1215 = vpop.xlane.xlu0 %1214
    %v1216 = vadd.f32 %v1107, %v1108
    %1217 = vadd.xlane.f32.xlu0 %v1216
    %v1218 = vpop.xlane.xlu0 %1217
    %v1219 = vadd.f32 %v1109, %v1110
    %1220 = vadd.xlane.f32.xlu0 %v1219
    %v1221 = vpop.xlane.xlu0 %1220
    %v1222 = vadd.f32 %v1111, %v1112
    %1223 = vadd.xlane.f32.xlu0 %v1222
    %v1224 = vpop.xlane.xlu0 %1223
    %v1225 = vadd.f32 %v1113, %v1114
    %1226 = vadd.xlane.f32.xlu0 %v1225
    %v1227 = vpop.xlane.xlu0 %1226
    %v1228 = vadd.f32 %v1115, %v1116
    %1229 = vadd.xlane.f32.xlu0 %v1228
    %v1230 = vpop.xlane.xlu0 %1229
    %v1231 = vadd.f32 %v1117, %v1118
    %1232 = vadd.xlane.f32.xlu0 %v1231
    %v1233 = vpop.xlane.xlu0 %1232
    %v1234 = vadd.f32 %v1119, %v1120
    %1235 = vadd.xlane.f32.xlu0 %v1234
    %v1236 = vpop.xlane.xlu0 %1235
    %v1237 = vadd.f32 %v1121, %v1122
    %1238 = vadd.xlane.f32.xlu0 %v1237
    %v1239 = vpop.xlane.xlu0 %1238
    %v1240 = vadd.f32 %v1123, %v1124
    %1241 = vadd.xlane.f32.xlu0 %v1240
    %v1242 = vpop.xlane.xlu0 %1241
    %v1243 = vadd.f32 %v1125, %v1126
    %1244 = vadd.xlane.f32.xlu0 %v1243
    %v1245 = vpop.xlane.xlu0 %1244
    %v1246 = vadd.f32 %v1127, %v1128
    %1247 = vadd.xlane.f32.xlu0 %v1246
    %v1248 = vpop.xlane.xlu0 %1247
    %v1249 = vadd.f32 %v1129, %v1130
    %1250 = vadd.xlane.f32.xlu0 %v1249
    %v1251 = vpop.xlane.xlu0 %1250
    %v1252 = vadd.f32 %v1131, %v1132
    %1253 = vadd.xlane.f32.xlu0 %v1252
    %v1254 = vpop.xlane.xlu0 %1253
    %v1255 = vadd.f32 %v1133, %v1134
    %1256 = vadd.xlane.f32.xlu0 %v1255
    %v1257 = vpop.xlane.xlu0 %1256
    %v1258 = vadd.f32 %v1135, %v1136
    %1259 = vadd.xlane.f32.xlu0 %v1258
    %v1260 = vpop.xlane.xlu0 %1259
    %v1261 = vadd.f32 %v1137, %v1138
    %1262 = vadd.xlane.f32.xlu0 %v1261
    %v1263 = vpop.xlane.xlu0 %1262
    %v1264 = vadd.f32 %v1139, %v1140
    %1265 = vadd.xlane.f32.xlu0 %v1264
    %v1266 = vpop.xlane.xlu0 %1265
    %v1267 = vadd.f32 %v1141, %v1142
    %1268 = vadd.xlane.f32.xlu0 %v1267
    %v1269 = vpop.xlane.xlu0 %1268
    %v1270 = vadd.f32 %v1143, %v1144
    %1271 = vadd.xlane.f32.xlu0 %v1270
    %v1272 = vpop.xlane.xlu0 %1271
    %v1273 = vadd.f32 %v1145, %v1146
    %1274 = vadd.xlane.f32.xlu0 %v1273
    %v1275 = vpop.xlane.xlu0 %1274
    %v1276 = vadd.f32 %v1147, %v1148
    %1277 = vadd.xlane.f32.xlu0 %v1276
    %v1278 = vpop.xlane.xlu0 %1277
    %v1279 = vadd.f32 %v1149, %v1150
    %1280 = vadd.xlane.f32.xlu0 %v1279
    %v1281 = vpop.xlane.xlu0 %1280
    %v1282 = vadd.f32 %v1151, %v1152
    %1283 = vadd.xlane.f32.xlu0 %v1282
    %v1284 = vpop.xlane.xlu0 %1283
    %v1285 = vadd.f32 %v1153, %v1154
    %1286 = vadd.xlane.f32.xlu0 %v1285
    %v1287 = vpop.xlane.xlu0 %1286
    %v1288 = vadd.f32 %v1155, %v1156
    %1289 = vadd.xlane.f32.xlu0 %v1288
    %v1290 = vpop.xlane.xlu0 %1289
    %v1291 = vadd.f32 %v1157, %v1158
    %1292 = vadd.xlane.f32.xlu0 %v1291
    %v1293 = vpop.xlane.xlu0 %1292
    %v1294 = vadd.f32 %v1159, %v1160
    %1295 = vadd.xlane.f32.xlu0 %v1294
    %v1296 = vpop.xlane.xlu0 %1295
    %v1297 = vadd.f32 %v1161, %v1162
    %1298 = vadd.xlane.f32.xlu0 %v1297
    %v1299 = vpop.xlane.xlu0 %1298
    %v1300 = vadd.f32 %v1163, %v1164
    %1301 = vadd.xlane.f32.xlu0 %v1300
    %v1302 = vpop.xlane.xlu0 %1301
    %v1303 = vadd.f32 %v1165, %v1166
    %1304 = vadd.xlane.f32.xlu0 %v1303
    %v1305 = vpop.xlane.xlu0 %1304
    %v1306 = vadd.f32 %v1167, %v1168
    %1307 = vadd.xlane.f32.xlu0 %v1306
    %v1308 = vpop.xlane.xlu0 %1307
    %v1309 = vadd.f32 %v1169, %v1170
    %1310 = vadd.xlane.f32.xlu0 %v1309
    %v1311 = vpop.xlane.xlu0 %1310
    %v1312 = vadd.f32 %v1171, %v1172
    %1313 = vadd.xlane.f32.xlu0 %v1312
    %v1314 = vpop.xlane.xlu0 %1313
    %v1315 = vadd.f32 %v1173, %v1174
    %1316 = vadd.xlane.f32.xlu0 %v1315
    %v1317 = vpop.xlane.xlu0 %1316
    %v1318 = vadd.f32 %v1175, %v1176
    %1319 = vadd.xlane.f32.xlu0 %v1318
    %v1320 = vpop.xlane.xlu0 %1319
    %v1321 = vmul.f32 %v1179, %v1032
    %v1322 = vmul.f32 %v1182, %v1032
    %v1323 = vmul.f32 %v1185, %v1032
    %v1324 = vmul.f32 %v1188, %v1032
    %v1325 = vmul.f32 %v1191, %v1032
    %v1326 = vmul.f32 %v1194, %v1032
    %v1327 = vmul.f32 %v1197, %v1032
    %v1328 = vmul.f32 %v1200, %v1032
    %v1329 = vmul.f32 %v1203, %v1032
    %v1330 = vmul.f32 %v1206, %v1032
    %v1331 = vmul.f32 %v1209, %v1032
    %v1332 = vmul.f32 %v1212, %v1032
    %v1333 = vmul.f32 %v1215, %v1032
    %v1334 = vmul.f32 %v1218, %v1032
    %v1335 = vmul.f32 %v1221, %v1032
    %v1336 = vmul.f32 %v1224, %v1032
    %v1337 = vmul.f32 %v1227, %v1032
    %v1338 = vmul.f32 %v1230, %v1032
    %v1339 = vmul.f32 %v1233, %v1032
    %v1340 = vmul.f32 %v1236, %v1032
    %v1341 = vmul.f32 %v1239, %v1032
    %v1342 = vmul.f32 %v1242, %v1032
    %v1343 = vmul.f32 %v1245, %v1032
    %v1344 = vmul.f32 %v1248, %v1032
    %v1345 = vmul.f32 %v1251, %v1032
    %v1346 = vmul.f32 %v1254, %v1032
    %v1347 = vmul.f32 %v1257, %v1032
    %v1348 = vmul.f32 %v1260, %v1032
    %v1349 = vmul.f32 %v1263, %v1032
    %v1350 = vmul.f32 %v1266, %v1032
    %v1351 = vmul.f32 %v1269, %v1032
    %v1352 = vmul.f32 %v1272, %v1032
    %v1353 = vmul.f32 %v1275, %v1032
    %v1354 = vmul.f32 %v1278, %v1032
    %v1355 = vmul.f32 %v1281, %v1032
    %v1356 = vmul.f32 %v1284, %v1032
    %v1357 = vmul.f32 %v1287, %v1032
    %v1358 = vmul.f32 %v1290, %v1032
    %v1359 = vmul.f32 %v1293, %v1032
    %v1360 = vmul.f32 %v1296, %v1032
    %v1361 = vmul.f32 %v1299, %v1032
    %v1362 = vmul.f32 %v1302, %v1032
    %v1363 = vmul.f32 %v1305, %v1032
    %v1364 = vmul.f32 %v1308, %v1032
    %v1365 = vmul.f32 %v1311, %v1032
    %v1366 = vmul.f32 %v1314, %v1032
    %v1367 = vmul.f32 %v1317, %v1032
    %v1368 = vmul.f32 %v1320, %v1032
    %v1369 = vmul.f32 %v1033, %v1033
    %v1370 = vmul.f32 %v1034, %v1034
    %v1371 = vmul.f32 %v1035, %v1035
    %v1372 = vmul.f32 %v1036, %v1036
    %v1373 = vmul.f32 %v1037, %v1037
    %v1374 = vmul.f32 %v1038, %v1038
    %v1375 = vmul.f32 %v1039, %v1039
    %v1376 = vmul.f32 %v1040, %v1040
    %v1377 = vmul.f32 %v1041, %v1041
    %v1378 = vmul.f32 %v1042, %v1042
    %v1379 = vmul.f32 %v1043, %v1043
    %v1380 = vmul.f32 %v1044, %v1044
    %v1381 = vmul.f32 %v1045, %v1045
    %v1382 = vmul.f32 %v1046, %v1046
    %v1383 = vmul.f32 %v1047, %v1047
    %v1384 = vmul.f32 %v1048, %v1048
    %v1385 = vmul.f32 %v1049, %v1049
    %v1386 = vmul.f32 %v1050, %v1050
    %v1387 = vmul.f32 %v1051, %v1051
    %v1388 = vmul.f32 %v1052, %v1052
    %v1389 = vmul.f32 %v1053, %v1053
    %v1390 = vmul.f32 %v1054, %v1054
    %v1391 = vmul.f32 %v1055, %v1055
    %v1392 = vmul.f32 %v1056, %v1056
    %v1393 = vmul.f32 %v1057, %v1057
    %v1394 = vmul.f32 %v1058, %v1058
    %v1395 = vmul.f32 %v1059, %v1059
    %v1396 = vmul.f32 %v1060, %v1060
    %v1397 = vmul.f32 %v1061, %v1061
    %v1398 = vmul.f32 %v1062, %v1062
    %v1399 = vmul.f32 %v1063, %v1063
    %v1400 = vmul.f32 %v1064, %v1064
    %v1401 = vmul.f32 %v1065, %v1065
    %v1402 = vmul.f32 %v1066, %v1066
    %v1403 = vmul.f32 %v1067, %v1067
    %v1404 = vmul.f32 %v1068, %v1068
    %v1405 = vmul.f32 %v1069, %v1069
    %v1406 = vmul.f32 %v1070, %v1070
    %v1407 = vmul.f32 %v1071, %v1071
    %v1408 = vmul.f32 %v1072, %v1072
    %v1409 = vmul.f32 %v1073, %v1073
    %v1410 = vmul.f32 %v1074, %v1074
    %v1411 = vmul.f32 %v1075, %v1075
    %v1412 = vmul.f32 %v1076, %v1076
    %v1413 = vmul.f32 %v1077, %v1077
    %v1414 = vmul.f32 %v1078, %v1078
    %v1415 = vmul.f32 %v1079, %v1079
    %v1416 = vmul.f32 %v1080, %v1080
    %v1417 = vsub.f32 %v1321, %v1369
    %v1418 = vsub.f32 %v1322, %v1370
    %v1419 = vsub.f32 %v1323, %v1371
    %v1420 = vsub.f32 %v1324, %v1372
    %v1421 = vsub.f32 %v1325, %v1373
    %v1422 = vsub.f32 %v1326, %v1374
    %v1423 = vsub.f32 %v1327, %v1375
    %v1424 = vsub.f32 %v1328, %v1376
    %v1425 = vsub.f32 %v1329, %v1377
    %v1426 = vsub.f32 %v1330, %v1378
    %v1427 = vsub.f32 %v1331, %v1379
    %v1428 = vsub.f32 %v1332, %v1380
    %v1429 = vsub.f32 %v1333, %v1381
    %v1430 = vsub.f32 %v1334, %v1382
    %v1431 = vsub.f32 %v1335, %v1383
    %v1432 = vsub.f32 %v1336, %v1384
    %v1433 = vsub.f32 %v1337, %v1385
    %v1434 = vsub.f32 %v1338, %v1386
    %v1435 = vsub.f32 %v1339, %v1387
    %v1436 = vsub.f32 %v1340, %v1388
    %v1437 = vsub.f32 %v1341, %v1389
    %v1438 = vsub.f32 %v1342, %v1390
    %v1439 = vsub.f32 %v1343, %v1391
    %v1440 = vsub.f32 %v1344, %v1392
    %v1441 = vsub.f32 %v1345, %v1393
    %v1442 = vsub.f32 %v1346, %v1394
    %v1443 = vsub.f32 %v1347, %v1395
    %v1444 = vsub.f32 %v1348, %v1396
    %v1445 = vsub.f32 %v1349, %v1397
    %v1446 = vsub.f32 %v1350, %v1398
    %v1447 = vsub.f32 %v1351, %v1399
    %v1448 = vsub.f32 %v1352, %v1400
    %v1449 = vsub.f32 %v1353, %v1401
    %v1450 = vsub.f32 %v1354, %v1402
    %v1451 = vsub.f32 %v1355, %v1403
    %v1452 = vsub.f32 %v1356, %v1404
    %v1453 = vsub.f32 %v1357, %v1405
    %v1454 = vsub.f32 %v1358, %v1406
    %v1455 = vsub.f32 %v1359, %v1407
    %v1456 = vsub.f32 %v1360, %v1408
    %v1457 = vsub.f32 %v1361, %v1409
    %v1458 = vsub.f32 %v1362, %v1410
    %v1459 = vsub.f32 %v1363, %v1411
    %v1460 = vsub.f32 %v1364, %v1412
    %v1461 = vsub.f32 %v1365, %v1413
    %v1462 = vsub.f32 %v1366, %v1414
    %v1463 = vsub.f32 %v1367, %v1415
    %v1464 = vsub.f32 %v1368, %v1416
    %v1465 = vmax.f32 %v1417, 0.0
    %v1466 = vmax.f32 %v1418, 0.0
    %v1467 = vmax.f32 %v1419, 0.0
    %v1468 = vmax.f32 %v1420, 0.0
    %v1469 = vmax.f32 %v1421, 0.0
    %v1470 = vmax.f32 %v1422, 0.0
    %v1471 = vmax.f32 %v1423, 0.0
    %v1472 = vmax.f32 %v1424, 0.0
    %v1473 = vmax.f32 %v1425, 0.0
    %v1474 = vmax.f32 %v1426, 0.0
    %v1475 = vmax.f32 %v1427, 0.0
    %v1476 = vmax.f32 %v1428, 0.0
    %v1477 = vmax.f32 %v1429, 0.0
    %v1478 = vmax.f32 %v1430, 0.0
    %v1479 = vmax.f32 %v1431, 0.0
    %v1480 = vmax.f32 %v1432, 0.0
    %v1481 = vmax.f32 %v1433, 0.0
    %v1482 = vmax.f32 %v1434, 0.0
    %v1483 = vmax.f32 %v1435, 0.0
    %v1484 = vmax.f32 %v1436, 0.0
    %v1485 = vmax.f32 %v1437, 0.0
    %v1486 = vmax.f32 %v1438, 0.0
    %v1487 = vmax.f32 %v1439, 0.0
    %v1488 = vmax.f32 %v1440, 0.0
    %v1489 = vmax.f32 %v1441, 0.0
    %v1490 = vmax.f32 %v1442, 0.0
    %v1491 = vmax.f32 %v1443, 0.0
    %v1492 = vmax.f32 %v1444, 0.0
    %v1493 = vmax.f32 %v1445, 0.0
    %v1494 = vmax.f32 %v1446, 0.0
    %v1495 = vmax.f32 %v1447, 0.0
    %v1496 = vmax.f32 %v1448, 0.0
    %v1497 = vmax.f32 %v1449, 0.0
    %v1498 = vmax.f32 %v1450, 0.0
    %v1499 = vmax.f32 %v1451, 0.0
    %v1500 = vmax.f32 %v1452, 0.0
    %v1501 = vmax.f32 %v1453, 0.0
    %v1502 = vmax.f32 %v1454, 0.0
    %v1503 = vmax.f32 %v1455, 0.0
    %v1504 = vmax.f32 %v1456, 0.0
    %v1505 = vmax.f32 %v1457, 0.0
    %v1506 = vmax.f32 %v1458, 0.0
    %v1507 = vmax.f32 %v1459, 0.0
    %v1508 = vmax.f32 %v1460, 0.0
    %v1509 = vmax.f32 %v1461, 0.0
    %v1510 = vmax.f32 %v1462, 0.0
    %v1511 = vmax.f32 %v1463, 0.0
    %v1512 = vmax.f32 %v1464, 0.0
    %v1513 = vadd.f32 %v1465, 1e-12
    %v1514 = vadd.f32 %v1466, 1e-12
    %v1515 = vadd.f32 %v1467, 1e-12
    %v1516 = vadd.f32 %v1468, 1e-12
    %v1517 = vadd.f32 %v1469, 1e-12
    %v1518 = vadd.f32 %v1470, 1e-12
    %v1519 = vadd.f32 %v1471, 1e-12
    %v1520 = vadd.f32 %v1472, 1e-12
    %v1521 = vadd.f32 %v1473, 1e-12
    %v1522 = vadd.f32 %v1474, 1e-12
    %v1523 = vadd.f32 %v1475, 1e-12
    %v1524 = vadd.f32 %v1476, 1e-12
    %v1525 = vadd.f32 %v1477, 1e-12
    %v1526 = vadd.f32 %v1478, 1e-12
    %v1527 = vadd.f32 %v1479, 1e-12
    %v1528 = vadd.f32 %v1480, 1e-12
    %v1529 = vadd.f32 %v1481, 1e-12
    %v1530 = vadd.f32 %v1482, 1e-12
    %v1531 = vadd.f32 %v1483, 1e-12
    %v1532 = vadd.f32 %v1484, 1e-12
    %v1533 = vadd.f32 %v1485, 1e-12
    %v1534 = vadd.f32 %v1486, 1e-12
    %v1535 = vadd.f32 %v1487, 1e-12
    %v1536 = vadd.f32 %v1488, 1e-12
    %v1537 = vadd.f32 %v1489, 1e-12
    %v1538 = vadd.f32 %v1490, 1e-12
    %v1539 = vadd.f32 %v1491, 1e-12
    %v1540 = vadd.f32 %v1492, 1e-12
    %v1541 = vadd.f32 %v1493, 1e-12
    %v1542 = vadd.f32 %v1494, 1e-12
    %v1543 = vadd.f32 %v1495, 1e-12
    %v1544 = vadd.f32 %v1496, 1e-12
    %v1545 = vadd.f32 %v1497, 1e-12
    %v1546 = vadd.f32 %v1498, 1e-12
    %v1547 = vadd.f32 %v1499, 1e-12
    %v1548 = vadd.f32 %v1500, 1e-12
    %v1549 = vadd.f32 %v1501, 1e-12
    %v1550 = vadd.f32 %v1502, 1e-12
    %v1551 = vadd.f32 %v1503, 1e-12
    %v1552 = vadd.f32 %v1504, 1e-12
    %v1553 = vadd.f32 %v1505, 1e-12
    %v1554 = vadd.f32 %v1506, 1e-12
    %v1555 = vadd.f32 %v1507, 1e-12
    %v1556 = vadd.f32 %v1508, 1e-12
    %v1557 = vadd.f32 %v1509, 1e-12
    %v1558 = vadd.f32 %v1510, 1e-12
    %v1559 = vadd.f32 %v1511, 1e-12
    %v1560 = vadd.f32 %v1512, 1e-12
    %v1561 = vrsqrt.pop %v1513
    %v1562 = vrsqrt.pop %v1514
    %v1563 = vrsqrt.pop %v1515
    %v1564 = vrsqrt.pop %v1516
    %v1565 = vrsqrt.pop %v1517
    %v1566 = vrsqrt.pop %v1518
    %v1567 = vrsqrt.pop %v1519
    %v1568 = vrsqrt.pop %v1520
    %v1569 = vrsqrt.pop %v1521
    %v1570 = vrsqrt.pop %v1522
    %v1571 = vrsqrt.pop %v1523
    %v1572 = vrsqrt.pop %v1524
    %v1573 = vrsqrt.pop %v1525
    %v1574 = vrsqrt.pop %v1526
    %v1575 = vrsqrt.pop %v1527
    %v1576 = vrsqrt.pop %v1528
    %v1577 = vrsqrt.pop %v1529
    %v1578 = vrsqrt.pop %v1530
    %v1579 = vrsqrt.pop %v1531
    %v1580 = vrsqrt.pop %v1532
    %v1581 = vrsqrt.pop %v1533
    %v1582 = vrsqrt.pop %v1534
    %v1583 = vrsqrt.pop %v1535
    %v1584 = vrsqrt.pop %v1536
    %v1585 = vrsqrt.pop %v1537
    %v1586 = vrsqrt.pop %v1538
    %v1587 = vrsqrt.pop %v1539
    %v1588 = vrsqrt.pop %v1540
    %v1589 = vrsqrt.pop %v1541
    %v1590 = vrsqrt.pop %v1542
    %v1591 = vrsqrt.pop %v1543
    %v1592 = vrsqrt.pop %v1544
    %v1593 = vrsqrt.pop %v1545
    %v1594 = vrsqrt.pop %v1546
    %v1595 = vrsqrt.pop %v1547
    %v1596 = vrsqrt.pop %v1548
    %v1597 = vrsqrt.pop %v1549
    %v1598 = vrsqrt.pop %v1550
    %v1599 = vrsqrt.pop %v1551
    %v1600 = vrsqrt.pop %v1552
    %v1601 = vrsqrt.pop %v1553
    %v1602 = vrsqrt.pop %v1554
    %v1603 = vrsqrt.pop %v1555
    %v1604 = vrsqrt.pop %v1556
    %v1605 = vrsqrt.pop %v1557
    %v1606 = vrsqrt.pop %v1558
    %v1607 = vrsqrt.pop %v1559
    %v1608 = vrsqrt.pop %v1560
    %v1609 = vsub.f32 %v792, %v1033
    %v1610 = vsub.f32 %v793, %v1033
    %v1611 = vsub.f32 %v794, %v1034
    %v1612 = vsub.f32 %v795, %v1034
    %v1613 = vsub.f32 %v796, %v1035
    %v1614 = vsub.f32 %v797, %v1035
    %v1615 = vsub.f32 %v798, %v1036
    %v1616 = vsub.f32 %v799, %v1036
    %v1617 = vsub.f32 %v800, %v1037
    %v1618 = vsub.f32 %v801, %v1037
    %v1619 = vsub.f32 %v802, %v1038
    %v1620 = vsub.f32 %v803, %v1038
    %v1621 = vsub.f32 %v804, %v1039
    %v1622 = vsub.f32 %v805, %v1039
    %v1623 = vsub.f32 %v806, %v1040
    %v1624 = vsub.f32 %v807, %v1040
    %v1625 = vsub.f32 %v808, %v1041
    %v1626 = vsub.f32 %v809, %v1041
    %v1627 = vsub.f32 %v810, %v1042
    %v1628 = vsub.f32 %v811, %v1042
    %v1629 = vsub.f32 %v812, %v1043
    %v1630 = vsub.f32 %v813, %v1043
    %v1631 = vsub.f32 %v814, %v1044
    %v1632 = vsub.f32 %v815, %v1044
    %v1633 = vsub.f32 %v816, %v1045
    %v1634 = vsub.f32 %v817, %v1045
    %v1635 = vsub.f32 %v818, %v1046
    %v1636 = vsub.f32 %v819, %v1046
    %v1637 = vsub.f32 %v820, %v1047
    %v1638 = vsub.f32 %v821, %v1047
    %v1639 = vsub.f32 %v822, %v1048
    %v1640 = vsub.f32 %v823, %v1048
    %v1641 = vsub.f32 %v824, %v1049
    %v1642 = vsub.f32 %v825, %v1049
    %v1643 = vsub.f32 %v826, %v1050
    %v1644 = vsub.f32 %v827, %v1050
    %v1645 = vsub.f32 %v828, %v1051
    %v1646 = vsub.f32 %v829, %v1051
    %v1647 = vsub.f32 %v830, %v1052
    %v1648 = vsub.f32 %v831, %v1052
    %v1649 = vsub.f32 %v832, %v1053
    %v1650 = vsub.f32 %v833, %v1053
    %v1651 = vsub.f32 %v834, %v1054
    %v1652 = vsub.f32 %v835, %v1054
    %v1653 = vsub.f32 %v836, %v1055
    %v1654 = vsub.f32 %v837, %v1055
    %v1655 = vsub.f32 %v838, %v1056
    %v1656 = vsub.f32 %v839, %v1056
    %v1657 = vsub.f32 %v840, %v1057
    %v1658 = vsub.f32 %v841, %v1057
    %v1659 = vsub.f32 %v842, %v1058
    %v1660 = vsub.f32 %v843, %v1058
    %v1661 = vsub.f32 %v844, %v1059
    %v1662 = vsub.f32 %v845, %v1059
    %v1663 = vsub.f32 %v846, %v1060
    %v1664 = vsub.f32 %v847, %v1060
    %v1665 = vsub.f32 %v848, %v1061
    %v1666 = vsub.f32 %v849, %v1061
    %v1667 = vsub.f32 %v850, %v1062
    %v1668 = vsub.f32 %v851, %v1062
    %v1669 = vsub.f32 %v852, %v1063
    %v1670 = vsub.f32 %v853, %v1063
    %v1671 = vsub.f32 %v854, %v1064
    %v1672 = vsub.f32 %v855, %v1064
    %v1673 = vsub.f32 %v856, %v1065
    %v1674 = vsub.f32 %v857, %v1065
    %v1675 = vsub.f32 %v858, %v1066
    %v1676 = vsub.f32 %v859, %v1066
    %v1677 = vsub.f32 %v860, %v1067
    %v1678 = vsub.f32 %v861, %v1067
    %v1679 = vsub.f32 %v862, %v1068
    %v1680 = vsub.f32 %v863, %v1068
    %v1681 = vsub.f32 %v864, %v1069
    %v1682 = vsub.f32 %v865, %v1069
    %v1683 = vsub.f32 %v866, %v1070
    %v1684 = vsub.f32 %v867, %v1070
    %v1685 = vsub.f32 %v868, %v1071
    %v1686 = vsub.f32 %v869, %v1071
    %v1687 = vsub.f32 %v870, %v1072
    %v1688 = vsub.f32 %v871, %v1072
    %v1689 = vsub.f32 %v872, %v1073
    %v1690 = vsub.f32 %v873, %v1073
    %v1691 = vsub.f32 %v874, %v1074
    %v1692 = vsub.f32 %v875, %v1074
    %v1693 = vsub.f32 %v876, %v1075
    %v1694 = vsub.f32 %v877, %v1075
    %v1695 = vsub.f32 %v878, %v1076
    %v1696 = vsub.f32 %v879, %v1076
    %v1697 = vsub.f32 %v880, %v1077
    %v1698 = vsub.f32 %v881, %v1077
    %v1699 = vsub.f32 %v882, %v1078
    %v1700 = vsub.f32 %v883, %v1078
    %v1701 = vsub.f32 %v884, %v1079
    %v1702 = vsub.f32 %v885, %v1079
    %v1703 = vsub.f32 %v886, %v1080
    %v1704 = vsub.f32 %v887, %v1080
    %v1706 = vlaneseq
    %v1707 = vshrl.u32 %v1706, 7
    %v1708 = vsub.s32 0, %v1707
    %v1709 = vrot.slane %v73, %v1708
    %v1710 = vlaneseq
    %v1711 = vshrl.u32 %v1710, 7
    %v1712 = vsub.s32 1, %v1711
    %v1713 = vrot.slane %v73, %v1712
    %v1716 = vmul.f32 %v1561, %v1709
    %v1717 = vmul.f32 %v1561, %v1713
    %v1718 = vmul.f32 %v1562, %v1709
    %v1719 = vmul.f32 %v1562, %v1713
    %v1720 = vmul.f32 %v1563, %v1709
    %v1721 = vmul.f32 %v1563, %v1713
    %v1722 = vmul.f32 %v1564, %v1709
    %v1723 = vmul.f32 %v1564, %v1713
    %v1724 = vmul.f32 %v1565, %v1709
    %v1725 = vmul.f32 %v1565, %v1713
    %v1726 = vmul.f32 %v1566, %v1709
    %v1727 = vmul.f32 %v1566, %v1713
    %v1728 = vmul.f32 %v1567, %v1709
    %v1729 = vmul.f32 %v1567, %v1713
    %v1730 = vmul.f32 %v1568, %v1709
    %v1731 = vmul.f32 %v1568, %v1713
    %v1732 = vmul.f32 %v1569, %v1709
    %v1733 = vmul.f32 %v1569, %v1713
    %v1734 = vmul.f32 %v1570, %v1709
    %v1735 = vmul.f32 %v1570, %v1713
    %v1736 = vmul.f32 %v1571, %v1709
    %v1737 = vmul.f32 %v1571, %v1713
    %v1738 = vmul.f32 %v1572, %v1709
    %v1739 = vmul.f32 %v1572, %v1713
    %v1740 = vmul.f32 %v1573, %v1709
    %v1741 = vmul.f32 %v1573, %v1713
    %v1742 = vmul.f32 %v1574, %v1709
    %v1743 = vmul.f32 %v1574, %v1713
    %v1744 = vmul.f32 %v1575, %v1709
    %v1745 = vmul.f32 %v1575, %v1713
    %v1746 = vmul.f32 %v1576, %v1709
    %v1747 = vmul.f32 %v1576, %v1713
    %v1748 = vmul.f32 %v1577, %v1709
    %v1749 = vmul.f32 %v1577, %v1713
    %v1750 = vmul.f32 %v1578, %v1709
    %v1751 = vmul.f32 %v1578, %v1713
    %v1752 = vmul.f32 %v1579, %v1709
    %v1753 = vmul.f32 %v1579, %v1713
    %v1754 = vmul.f32 %v1580, %v1709
    %v1755 = vmul.f32 %v1580, %v1713
    %v1756 = vmul.f32 %v1581, %v1709
    %v1757 = vmul.f32 %v1581, %v1713
    %v1758 = vmul.f32 %v1582, %v1709
    %v1759 = vmul.f32 %v1582, %v1713
    %v1760 = vmul.f32 %v1583, %v1709
    %v1761 = vmul.f32 %v1583, %v1713
    %v1762 = vmul.f32 %v1584, %v1709
    %v1763 = vmul.f32 %v1584, %v1713
    %v1764 = vmul.f32 %v1585, %v1709
    %v1765 = vmul.f32 %v1585, %v1713
    %v1766 = vmul.f32 %v1586, %v1709
    %v1767 = vmul.f32 %v1586, %v1713
    %v1768 = vmul.f32 %v1587, %v1709
    %v1769 = vmul.f32 %v1587, %v1713
    %v1770 = vmul.f32 %v1588, %v1709
    %v1771 = vmul.f32 %v1588, %v1713
    %v1772 = vmul.f32 %v1589, %v1709
    %v1773 = vmul.f32 %v1589, %v1713
    %v1774 = vmul.f32 %v1590, %v1709
    %v1775 = vmul.f32 %v1590, %v1713
    %v1776 = vmul.f32 %v1591, %v1709
    %v1777 = vmul.f32 %v1591, %v1713
    %v1778 = vmul.f32 %v1592, %v1709
    %v1779 = vmul.f32 %v1592, %v1713
    %v1780 = vmul.f32 %v1593, %v1709
    %v1781 = vmul.f32 %v1593, %v1713
    %v1782 = vmul.f32 %v1594, %v1709
    %v1783 = vmul.f32 %v1594, %v1713
    %v1784 = vmul.f32 %v1595, %v1709
    %v1785 = vmul.f32 %v1595, %v1713
    %v1786 = vmul.f32 %v1596, %v1709
    %v1787 = vmul.f32 %v1596, %v1713
    %v1788 = vmul.f32 %v1597, %v1709
    %v1789 = vmul.f32 %v1597, %v1713
    %v1790 = vmul.f32 %v1598, %v1709
    %v1791 = vmul.f32 %v1598, %v1713
    %v1792 = vmul.f32 %v1599, %v1709
    %v1793 = vmul.f32 %v1599, %v1713
    %v1794 = vmul.f32 %v1600, %v1709
    %v1795 = vmul.f32 %v1600, %v1713
    %v1796 = vmul.f32 %v1601, %v1709
    %v1797 = vmul.f32 %v1601, %v1713
    %v1798 = vmul.f32 %v1602, %v1709
    %v1799 = vmul.f32 %v1602, %v1713
    %v1800 = vmul.f32 %v1603, %v1709
    %v1801 = vmul.f32 %v1603, %v1713
    %v1802 = vmul.f32 %v1604, %v1709
    %v1803 = vmul.f32 %v1604, %v1713
    %v1804 = vmul.f32 %v1605, %v1709
    %v1805 = vmul.f32 %v1605, %v1713
    %v1806 = vmul.f32 %v1606, %v1709
    %v1807 = vmul.f32 %v1606, %v1713
    %v1808 = vmul.f32 %v1607, %v1709
    %v1809 = vmul.f32 %v1607, %v1713
    %v1810 = vmul.f32 %v1608, %v1709
    %v1811 = vmul.f32 %v1608, %v1713
    %v1812 = vmul.f32 %v1609, %v1716
    %v1813 = vmul.f32 %v1610, %v1717
    %v1814 = vmul.f32 %v1611, %v1718
    %v1815 = vmul.f32 %v1612, %v1719
    %v1816 = vmul.f32 %v1613, %v1720
    %v1817 = vmul.f32 %v1614, %v1721
    %v1818 = vmul.f32 %v1615, %v1722
    %v1819 = vmul.f32 %v1616, %v1723
    %v1820 = vmul.f32 %v1617, %v1724
    %v1821 = vmul.f32 %v1618, %v1725
    %v1822 = vmul.f32 %v1619, %v1726
    %v1823 = vmul.f32 %v1620, %v1727
    %v1824 = vmul.f32 %v1621, %v1728
    %v1825 = vmul.f32 %v1622, %v1729
    %v1826 = vmul.f32 %v1623, %v1730
    %v1827 = vmul.f32 %v1624, %v1731
    %v1828 = vmul.f32 %v1625, %v1732
    %v1829 = vmul.f32 %v1626, %v1733
    %v1830 = vmul.f32 %v1627, %v1734
    %v1831 = vmul.f32 %v1628, %v1735
    %v1832 = vmul.f32 %v1629, %v1736
    %v1833 = vmul.f32 %v1630, %v1737
    %v1834 = vmul.f32 %v1631, %v1738
    %v1835 = vmul.f32 %v1632, %v1739
    %v1836 = vmul.f32 %v1633, %v1740
    %v1837 = vmul.f32 %v1634, %v1741
    %v1838 = vmul.f32 %v1635, %v1742
    %v1839 = vmul.f32 %v1636, %v1743
    %v1840 = vmul.f32 %v1637, %v1744
    %v1841 = vmul.f32 %v1638, %v1745
    %v1842 = vmul.f32 %v1639, %v1746
    %v1843 = vmul.f32 %v1640, %v1747
    %v1844 = vmul.f32 %v1641, %v1748
    %v1845 = vmul.f32 %v1642, %v1749
    %v1846 = vmul.f32 %v1643, %v1750
    %v1847 = vmul.f32 %v1644, %v1751
    %v1848 = vmul.f32 %v1645, %v1752
    %v1849 = vmul.f32 %v1646, %v1753
    %v1850 = vmul.f32 %v1647, %v1754
    %v1851 = vmul.f32 %v1648, %v1755
    %v1852 = vmul.f32 %v1649, %v1756
    %v1853 = vmul.f32 %v1650, %v1757
    %v1854 = vmul.f32 %v1651, %v1758
    %v1855 = vmul.f32 %v1652, %v1759
    %v1856 = vmul.f32 %v1653, %v1760
    %v1857 = vmul.f32 %v1654, %v1761
    %v1858 = vmul.f32 %v1655, %v1762
    %v1859 = vmul.f32 %v1656, %v1763
    %v1860 = vmul.f32 %v1657, %v1764
    %v1861 = vmul.f32 %v1658, %v1765
    %v1862 = vmul.f32 %v1659, %v1766
    %v1863 = vmul.f32 %v1660, %v1767
    %v1864 = vmul.f32 %v1661, %v1768
    %v1865 = vmul.f32 %v1662, %v1769
    %v1866 = vmul.f32 %v1663, %v1770
    %v1867 = vmul.f32 %v1664, %v1771
    %v1868 = vmul.f32 %v1665, %v1772
    %v1869 = vmul.f32 %v1666, %v1773
    %v1870 = vmul.f32 %v1667, %v1774
    %v1871 = vmul.f32 %v1668, %v1775
    %v1872 = vmul.f32 %v1669, %v1776
    %v1873 = vmul.f32 %v1670, %v1777
    %v1874 = vmul.f32 %v1671, %v1778
    %v1875 = vmul.f32 %v1672, %v1779
    %v1876 = vmul.f32 %v1673, %v1780
    %v1877 = vmul.f32 %v1674, %v1781
    %v1878 = vmul.f32 %v1675, %v1782
    %v1879 = vmul.f32 %v1676, %v1783
    %v1880 = vmul.f32 %v1677, %v1784
    %v1881 = vmul.f32 %v1678, %v1785
    %v1882 = vmul.f32 %v1679, %v1786
    %v1883 = vmul.f32 %v1680, %v1787
    %v1884 = vmul.f32 %v1681, %v1788
    %v1885 = vmul.f32 %v1682, %v1789
    %v1886 = vmul.f32 %v1683, %v1790
    %v1887 = vmul.f32 %v1684, %v1791
    %v1888 = vmul.f32 %v1685, %v1792
    %v1889 = vmul.f32 %v1686, %v1793
    %v1890 = vmul.f32 %v1687, %v1794
    %v1891 = vmul.f32 %v1688, %v1795
    %v1892 = vmul.f32 %v1689, %v1796
    %v1893 = vmul.f32 %v1690, %v1797
    %v1894 = vmul.f32 %v1691, %v1798
    %v1895 = vmul.f32 %v1692, %v1799
    %v1896 = vmul.f32 %v1693, %v1800
    %v1897 = vmul.f32 %v1694, %v1801
    %v1898 = vmul.f32 %v1695, %v1802
    %v1899 = vmul.f32 %v1696, %v1803
    %v1900 = vmul.f32 %v1697, %v1804
    %v1901 = vmul.f32 %v1698, %v1805
    %v1902 = vmul.f32 %v1699, %v1806
    %v1903 = vmul.f32 %v1700, %v1807
    %v1904 = vmul.f32 %v1701, %v1808
    %v1905 = vmul.f32 %v1702, %v1809
    %v1906 = vmul.f32 %v1703, %v1810
    %v1907 = vmul.f32 %v1704, %v1811
    %v1909 = vlaneseq
    %v1910 = vshrl.u32 %v1909, 7
    %v1911 = vsub.s32 0, %v1910
    %v1912 = vrot.slane %v75, %v1911
    %v1913 = vlaneseq
    %v1914 = vshrl.u32 %v1913, 7
    %v1915 = vsub.s32 1, %v1914
    %v1916 = vrot.slane %v75, %v1915
    %v1919 = vadd.f32 %v1812, %v1912
    %v1920 = vadd.f32 %v1813, %v1916
    %v1921 = vadd.f32 %v1814, %v1912
    %v1922 = vadd.f32 %v1815, %v1916
    %v1923 = vadd.f32 %v1816, %v1912
    %v1924 = vadd.f32 %v1817, %v1916
    %v1925 = vadd.f32 %v1818, %v1912
    %v1926 = vadd.f32 %v1819, %v1916
    %v1927 = vadd.f32 %v1820, %v1912
    %v1928 = vadd.f32 %v1821, %v1916
    %v1929 = vadd.f32 %v1822, %v1912
    %v1930 = vadd.f32 %v1823, %v1916
    %v1931 = vadd.f32 %v1824, %v1912
    %v1932 = vadd.f32 %v1825, %v1916
    %v1933 = vadd.f32 %v1826, %v1912
    %v1934 = vadd.f32 %v1827, %v1916
    %v1935 = vadd.f32 %v1828, %v1912
    %v1936 = vadd.f32 %v1829, %v1916
    %v1937 = vadd.f32 %v1830, %v1912
    %v1938 = vadd.f32 %v1831, %v1916
    %v1939 = vadd.f32 %v1832, %v1912
    %v1940 = vadd.f32 %v1833, %v1916
    %v1941 = vadd.f32 %v1834, %v1912
    %v1942 = vadd.f32 %v1835, %v1916
    %v1943 = vadd.f32 %v1836, %v1912
    %v1944 = vadd.f32 %v1837, %v1916
    %v1945 = vadd.f32 %v1838, %v1912
    %v1946 = vadd.f32 %v1839, %v1916
    %v1947 = vadd.f32 %v1840, %v1912
    %v1948 = vadd.f32 %v1841, %v1916
    %v1949 = vadd.f32 %v1842, %v1912
    %v1950 = vadd.f32 %v1843, %v1916
    %v1951 = vadd.f32 %v1844, %v1912
    %v1952 = vadd.f32 %v1845, %v1916
    %v1953 = vadd.f32 %v1846, %v1912
    %v1954 = vadd.f32 %v1847, %v1916
    %v1955 = vadd.f32 %v1848, %v1912
    %v1956 = vadd.f32 %v1849, %v1916
    %v1957 = vadd.f32 %v1850, %v1912
    %v1958 = vadd.f32 %v1851, %v1916
    %v1959 = vadd.f32 %v1852, %v1912
    %v1960 = vadd.f32 %v1853, %v1916
    %v1961 = vadd.f32 %v1854, %v1912
    %v1962 = vadd.f32 %v1855, %v1916
    %v1963 = vadd.f32 %v1856, %v1912
    %v1964 = vadd.f32 %v1857, %v1916
    %v1965 = vadd.f32 %v1858, %v1912
    %v1966 = vadd.f32 %v1859, %v1916
    %v1967 = vadd.f32 %v1860, %v1912
    %v1968 = vadd.f32 %v1861, %v1916
    %v1969 = vadd.f32 %v1862, %v1912
    %v1970 = vadd.f32 %v1863, %v1916
    %v1971 = vadd.f32 %v1864, %v1912
    %v1972 = vadd.f32 %v1865, %v1916
    %v1973 = vadd.f32 %v1866, %v1912
    %v1974 = vadd.f32 %v1867, %v1916
    %v1975 = vadd.f32 %v1868, %v1912
    %v1976 = vadd.f32 %v1869, %v1916
    %v1977 = vadd.f32 %v1870, %v1912
    %v1978 = vadd.f32 %v1871, %v1916
    %v1979 = vadd.f32 %v1872, %v1912
    %v1980 = vadd.f32 %v1873, %v1916
    %v1981 = vadd.f32 %v1874, %v1912
    %v1982 = vadd.f32 %v1875, %v1916
    %v1983 = vadd.f32 %v1876, %v1912
    %v1984 = vadd.f32 %v1877, %v1916
    %v1985 = vadd.f32 %v1878, %v1912
    %v1986 = vadd.f32 %v1879, %v1916
    %v1987 = vadd.f32 %v1880, %v1912
    %v1988 = vadd.f32 %v1881, %v1916
    %v1989 = vadd.f32 %v1882, %v1912
    %v1990 = vadd.f32 %v1883, %v1916
    %v1991 = vadd.f32 %v1884, %v1912
    %v1992 = vadd.f32 %v1885, %v1916
    %v1993 = vadd.f32 %v1886, %v1912
    %v1994 = vadd.f32 %v1887, %v1916
    %v1995 = vadd.f32 %v1888, %v1912
    %v1996 = vadd.f32 %v1889, %v1916
    %v1997 = vadd.f32 %v1890, %v1912
    %v1998 = vadd.f32 %v1891, %v1916
    %v1999 = vadd.f32 %v1892, %v1912
    %v2000 = vadd.f32 %v1893, %v1916
    %v2001 = vadd.f32 %v1894, %v1912
    %v2002 = vadd.f32 %v1895, %v1916
    %v2003 = vadd.f32 %v1896, %v1912
    %v2004 = vadd.f32 %v1897, %v1916
    %v2005 = vadd.f32 %v1898, %v1912
    %v2006 = vadd.f32 %v1899, %v1916
    %v2007 = vadd.f32 %v1900, %v1912
    %v2008 = vadd.f32 %v1901, %v1916
    %v2009 = vadd.f32 %v1902, %v1912
    %v2010 = vadd.f32 %v1903, %v1916
    %v2011 = vadd.f32 %v1904, %v1912
    %v2012 = vadd.f32 %v1905, %v1916
    %v2013 = vadd.f32 %v1906, %v1912
    %v2014 = vadd.f32 %v1907, %v1916
    %2015 = vst [vmem:[#allocation10] sm:$0xff] %v1919
    %2016 = vst [vmem:[#allocation10 + $0x8] sm:$0xff] %v1920
    %2017 = vst [vmem:[#allocation10 + $0x10] sm:$0xff] %v1921
    %2018 = vst [vmem:[#allocation10 + $0x18] sm:$0xff] %v1922
    %2019 = vst [vmem:[#allocation10 + $0x20] sm:$0xff] %v1923
    %2020 = vst [vmem:[#allocation10 + $0x28] sm:$0xff] %v1924
    %2021 = vst [vmem:[#allocation10 + $0x30] sm:$0xff] %v1925
    %2022 = vst [vmem:[#allocation10 + $0x38] sm:$0xff] %v1926
    %2023 = vst [vmem:[#allocation10 + $0x40] sm:$0xff] %v1927
    %2024 = vst [vmem:[#allocation10 + $0x48] sm:$0xff] %v1928
    %2025 = vst [vmem:[#allocation10 + $0x50] sm:$0xff] %v1929
    %2026 = vst [vmem:[#allocation10 + $0x58] sm:$0xff] %v1930
    %2027 = vst [vmem:[#allocation10 + $0x60] sm:$0xff] %v1931
    %2028 = vst [vmem:[#allocation10 + $0x68] sm:$0xff] %v1932
    %2029 = vst [vmem:[#allocation10 + $0x70] sm:$0xff] %v1933
    %2030 = vst [vmem:[#allocation10 + $0x78] sm:$0xff] %v1934
    %2031 = vst [vmem:[#allocation10 + $0x80] sm:$0xff] %v1935
    %2032 = vst [vmem:[#allocation10 + $0x88] sm:$0xff] %v1936
    %2033 = vst [vmem:[#allocation10 + $0x90] sm:$0xff] %v1937
    %2034 = vst [vmem:[#allocation10 + $0x98] sm:$0xff] %v1938
    %2035 = vst [vmem:[#allocation10 + $0xa0] sm:$0xff] %v1939
    %2036 = vst [vmem:[#allocation10 + $0xa8] sm:$0xff] %v1940
    %2037 = vst [vmem:[#allocation10 + $0xb0] sm:$0xff] %v1941
    %2038 = vst [vmem:[#allocation10 + $0xb8] sm:$0xff] %v1942
    %2039 = vst [vmem:[#allocation10 + $0xc0] sm:$0xff] %v1943
    %2040 = vst [vmem:[#allocation10 + $0xc8] sm:$0xff] %v1944
    %2041 = vst [vmem:[#allocation10 + $0xd0] sm:$0xff] %v1945
    %2042 = vst [vmem:[#allocation10 + $0xd8] sm:$0xff] %v1946
    %2043 = vst [vmem:[#allocation10 + $0xe0] sm:$0xff] %v1947
    %2044 = vst [vmem:[#allocation10 + $0xe8] sm:$0xff] %v1948
    %2045 = vst [vmem:[#allocation10 + $0xf0] sm:$0xff] %v1949
    %2046 = vst [vmem:[#allocation10 + $0xf8] sm:$0xff] %v1950
    %2047 = vst [vmem:[#allocation10 + $0x100] sm:$0xff] %v1951
    %2048 = vst [vmem:[#allocation10 + $0x108] sm:$0xff] %v1952
    %2049 = vst [vmem:[#allocation10 + $0x110] sm:$0xff] %v1953
    %2050 = vst [vmem:[#allocation10 + $0x118] sm:$0xff] %v1954
    %2051 = vst [vmem:[#allocation10 + $0x120] sm:$0xff] %v1955
    %2052 = vst [vmem:[#allocation10 + $0x128] sm:$0xff] %v1956
    %2053 = vst [vmem:[#allocation10 + $0x130] sm:$0xff] %v1957
    %2054 = vst [vmem:[#allocation10 + $0x138] sm:$0xff] %v1958
    %2055 = vst [vmem:[#allocation10 + $0x140] sm:$0xff] %v1959
    %2056 = vst [vmem:[#allocation10 + $0x148] sm:$0xff] %v1960
    %2057 = vst [vmem:[#allocation10 + $0x150] sm:$0xff] %v1961
    %2058 = vst [vmem:[#allocation10 + $0x158] sm:$0xff] %v1962
    %2059 = vst [vmem:[#allocation10 + $0x160] sm:$0xff] %v1963
    %2060 = vst [vmem:[#allocation10 + $0x168] sm:$0xff] %v1964
    %2061 = vst [vmem:[#allocation10 + $0x170] sm:$0xff] %v1965
    %2062 = vst [vmem:[#allocation10 + $0x178] sm:$0xff] %v1966
    %2063 = vst [vmem:[#allocation10 + $0x180] sm:$0xff] %v1967
    %2064 = vst [vmem:[#allocation10 + $0x188] sm:$0xff] %v1968
    %2065 = vst [vmem:[#allocation10 + $0x190] sm:$0xff] %v1969
    %2066 = vst [vmem:[#allocation10 + $0x198] sm:$0xff] %v1970
    %2067 = vst [vmem:[#allocation10 + $0x1a0] sm:$0xff] %v1971
    %2068 = vst [vmem:[#allocation10 + $0x1a8] sm:$0xff] %v1972
    %2069 = vst [vmem:[#allocation10 + $0x1b0] sm:$0xff] %v1973
    %2070 = vst [vmem:[#allocation10 + $0x1b8] sm:$0xff] %v1974
    %2071 = vst [vmem:[#allocation10 + $0x1c0] sm:$0xff] %v1975
    %2072 = vst [vmem:[#allocation10 + $0x1c8] sm:$0xff] %v1976
    %2073 = vst [vmem:[#allocation10 + $0x1d0] sm:$0xff] %v1977
    %2074 = vst [vmem:[#allocation10 + $0x1d8] sm:$0xff] %v1978
    %2075 = vst [vmem:[#allocation10 + $0x1e0] sm:$0xff] %v1979
    %2076 = vst [vmem:[#allocation10 + $0x1e8] sm:$0xff] %v1980
    %2077 = vst [vmem:[#allocation10 + $0x1f0] sm:$0xff] %v1981
    %2078 = vst [vmem:[#allocation10 + $0x1f8] sm:$0xff] %v1982
    %2079 = vst [vmem:[#allocation10 + $0x200] sm:$0xff] %v1983
    %2080 = vst [vmem:[#allocation10 + $0x208] sm:$0xff] %v1984
    %2081 = vst [vmem:[#allocation10 + $0x210] sm:$0xff] %v1985
    %2082 = vst [vmem:[#allocation10 + $0x218] sm:$0xff] %v1986
    %2083 = vst [vmem:[#allocation10 + $0x220] sm:$0xff] %v1987
    %2084 = vst [vmem:[#allocation10 + $0x228] sm:$0xff] %v1988
    %2085 = vst [vmem:[#allocation10 + $0x230] sm:$0xff] %v1989
    %2086 = vst [vmem:[#allocation10 + $0x238] sm:$0xff] %v1990
    %2087 = vst [vmem:[#allocation10 + $0x240] sm:$0xff] %v1991
    %2088 = vst [vmem:[#allocation10 + $0x248] sm:$0xff] %v1992
    %2089 = vst [vmem:[#allocation10 + $0x250] sm:$0xff] %v1993
    %2090 = vst [vmem:[#allocation10 + $0x258] sm:$0xff] %v1994
    %2091 = vst [vmem:[#allocation10 + $0x260] sm:$0xff] %v1995
    %2092 = vst [vmem:[#allocation10 + $0x268] sm:$0xff] %v1996
    %2093 = vst [vmem:[#allocation10 + $0x270] sm:$0xff] %v1997
    %2094 = vst [vmem:[#allocation10 + $0x278] sm:$0xff] %v1998
    %2095 = vst [vmem:[#allocation10 + $0x280] sm:$0xff] %v1999
    %2096 = vst [vmem:[#allocation10 + $0x288] sm:$0xff] %v2000
    %2097 = vst [vmem:[#allocation10 + $0x290] sm:$0xff] %v2001
    %2098 = vst [vmem:[#allocation10 + $0x298] sm:$0xff] %v2002
    %2099 = vst [vmem:[#allocation10 + $0x2a0] sm:$0xff] %v2003
    %2100 = vst [vmem:[#allocation10 + $0x2a8] sm:$0xff] %v2004
    %2101 = vst [vmem:[#allocation10 + $0x2b0] sm:$0xff] %v2005
    %2102 = vst [vmem:[#allocation10 + $0x2b8] sm:$0xff] %v2006
    %2103 = vst [vmem:[#allocation10 + $0x2c0] sm:$0xff] %v2007
    %2104 = vst [vmem:[#allocation10 + $0x2c8] sm:$0xff] %v2008
    %2105 = vst [vmem:[#allocation10 + $0x2d0] sm:$0xff] %v2009
    %2106 = vst [vmem:[#allocation10 + $0x2d8] sm:$0xff] %v2010
    %2107 = vst [vmem:[#allocation10 + $0x2e0] sm:$0xff] %v2011
    %2108 = vst [vmem:[#allocation10 + $0x2e8] sm:$0xff] %v2012
    %2109 = vst [vmem:[#allocation10 + $0x2f0] sm:$0xff] %v2013
    %2110 = vst [vmem:[#allocation10 + $0x2f8] sm:$0xff] %v2014
    // Predicated region
    $region34: #{tpu_custom_call.1} parent=1 // pred_check
      _
    $region35: #{tpu_custom_call.1} parent=1 // pred_check_branch
      %2112 = sbr.rel (0) target = $region37
    $region36: #{tpu_custom_call.1} parent=1 // pred_region
      %s2114 = ssub.s32 12288, 12288
      %2115 = vsyncadd [#allocation4], %s2114
      %s2116 = sshll.u32 [#allocation10], 4
      %s2117 = int_to_ptr.vmem [resolvable:$true] %s2116
      %2122 = dma.vmem_to_hbm [thread:$0]  %s2117, 12288, %s4, [#allocation4], 256, 256, 16
    $region37: #{tpu_custom_call.1} parent=1 // pred_fallthru
      _
    // Predicated region
    $region38: #{tpu_custom_call.1} parent=1 // pred_check
      _
    $region39: #{tpu_custom_call.1} parent=1 // pred_check_branch
      %2124 = sbr.rel (0) target = $region41
    $region40: #{tpu_custom_call.1} parent=1 // pred_region
      %2125 = dma.done [#allocation4], 12288
    $region41: #{tpu_custom_call.1} parent=1 // pred_fallthru
      _
    %2126 = vsyncpa [#allocation3], 1
    %2127 = vsyncpa [#allocation6], 1
    %2128 = vsyncpa [#allocation9], 1
    %2129 = vsyncpa [#allocation4], 1

</llo_original>
